<compile_context>
chip_gen: v7x
topology: tpu7x:2x2x1
jax: 0.10.0
libtpu: 0.0.40
codegen_flags: <defaults>
</compile_context>

<pallas_src>
import functools

import jax
import jax.numpy as jnp
from jax.experimental import pallas as pl
from jax.experimental.pallas import tpu as pltpu  # noqa: F401  (no grid / manual DMA needed at this scale)


# ------------------------------ configuration ----------------------------- #

class Config:
    periods = (2, 3, 5)
    mpd_kernel_size = 5
    mpd_stride = 3
    leaky = 0.1


# Scaled down from HiFi-GAN's (1, 32, 128, 512, 1024, 1024) channel ladder:
# 5 convs + conv_post = 6 layers -> 6 feature maps per sub-discriminator.
SUB_CHANNELS = (1, 4, 8, 16, 32, 32)


def _get_padding(k):
    return (k - 1) // 2


def layer_specs(cfg):
    """Static per-layer structure: (c_in, c_out, K, stride, pad, apply_act)."""
    K, S = cfg.mpd_kernel_size, cfg.mpd_stride
    chans = SUB_CHANNELS
    specs = []
    for i in range(len(chans) - 1):
        stride = S if i < len(chans) - 2 else 1    # last conv in the stack: s=1
        specs.append((chans[i], chans[i + 1], K, stride, _get_padding(K), True))
    specs.append((chans[-1], 1, 3, 1, 1, False))   # conv_post, no activation
    return tuple(specs)


def init_subdisc_params(key, cfg):
    """Deterministic weights: list of (w (C_out,C_in,K), b (C_out,))."""
    # TODO(synk): weight_norm / spectral_norm are reparameterizations only;
    # with deterministic in-script init the effective weight equals the raw
    # weight.  Trained PyTorch weights must be de-reparameterized before load.
    params = []
    for i, (cin, cout, k, _, _, _) in enumerate(layer_specs(cfg)):
        kw = jax.random.fold_in(key, 2 * i)
        kb = jax.random.fold_in(key, 2 * i + 1)
        w = 0.02 * jax.random.normal(kw, (cout, cin, k), jnp.float32)
        b = 0.01 * jax.random.normal(kb, (cout,), jnp.float32)
        params.append((w, b))
    return params


# --------------------------- weight packing (host) ------------------------- #

def _densify_conv(w, h_in, h_out, stride, pad):
    """Fold a (K,1) Conv2d (zero-pad `pad`, stride `stride` along H) into a
    dense matrix M[(c_in,h_in), (c_out,h_out)].  Exact rewrite (H is small)."""
    c_out, c_in, K = w.shape
    # padded-input row used by output row h_out and tap k:  h_out*stride - pad + k
    pos = jnp.arange(h_out)[:, None] * stride - pad + jnp.arange(K)[None, :]
    sel = (pos[..., None] == jnp.arange(h_in)[None, None, :]).astype(w.dtype)
    m = jnp.einsum("oik,hkj->ijoh", w, sel)          # (c_in, h_in, c_out, h_out)
    return m.reshape(c_in * h_in, c_out * h_out)


# ------------------------------ Pallas kernel ------------------------------ #

def _fused_ladder_kernel(*refs, num_layers, leaky, acts):
    # refs = (x, m_0, b_0, ..., m_{L-1}, b_{L-1}, o_0, ..., o_{L-1})
    x_ref = refs[0]
    p_refs = refs[1:1 + 2 * num_layers]
    o_refs = refs[1 + 2 * num_layers:]
    act = x_ref[...]                                  # (N, C0*H0), lane-dense
    for l in range(num_layers):                       # static unroll, 6 layers
        m_ref = p_refs[2 * l]
        b_ref = p_refs[2 * l + 1]
        z = jnp.dot(act, m_ref[...], preferred_element_type=jnp.float32)
        z = z + b_ref[...]                            # (1, D) broadcast
        if acts[l]:
            z = jnp.where(z > 0.0, z, leaky * z)
        o_refs[l][...] = z                            # lane-dense (N, C_l*H_l)
        act = z


def fused_subdisc_call(a0, dense_params, acts, leaky):
    """Run the whole 6-layer ladder for one period in a single pallas_call."""
    n = a0.shape[0]
    num_layers = len(dense_params)
    out_shape = tuple(
        jax.ShapeDtypeStruct((n, m.shape[1]), jnp.float32)
        for (m, _) in dense_params)
    kern = functools.partial(_fused_ladder_kernel, num_layers=num_layers,
                             leaky=leaky, acts=tuple(acts))
    args = [a0]
    for (m, bvec) in dense_params:
        args.extend((m, bvec))
    # No grid: every input/output is a single whole-array VMEM block (the
    # entire ladder is a few tens of KiB, far below VMEM on v5e/v6e/v7x).
    return pl.pallas_call(kern, out_shape=out_shape)(*args)


# ------------------------------ model (glue) ------------------------------- #

def mp_subdisc_forward(weights, specs, x, period, leaky):
    """x: (B, 1, T).  Returns (pred (B, flat), list of 6 NCHW feature maps)."""
    B, C, T = x.shape
    if T % period != 0:
        n_pad = period - (T % period)
        x = jnp.pad(x, ((0, 0), (0, 0), (0, n_pad)), mode="reflect")
        T = T + n_pad
    H0 = T // period
    # Fold to (B, 1, H0, W=period) and present lane-dense to the kernel:
    # rows = (b, w) pairs, columns = (c, h) pairs.
    xf = x.reshape(B, C, H0, period)
    a0 = xf[:, 0].transpose(0, 2, 1).reshape(B * period, H0)

    # One-time weight packing: padding / stride / taps folded into a dense
    # (C_in*H_in, C_out*H_out) matrix per layer; bias broadcast over H.
    dense_params, acts, out_dims = [], [], []
    h_in = H0
    for (w, b), (_, c_out, K, stride, pad, act) in zip(weights, specs):
        h_out = (h_in + 2 * pad - K) // stride + 1
        m = _densify_conv(w, h_in, h_out, stride, pad)
        bvec = jnp.repeat(b, h_out)[None, :]           # (1, C_out*H_out)
        dense_params.append((m, bvec))
        acts.append(act)
        out_dims.append((c_out, h_out))
        h_in = h_out

    outs2d = fused_subdisc_call(a0, dense_params, acts, leaky)

    fmaps = []
    for z, (c_out, h_out) in zip(outs2d, out_dims):
        # (B*W, C*H) -> (B, C, H, W)   (matches the PyTorch NCHW fmaps)
        fmaps.append(z.reshape(B, period, c_out, h_out).transpose(0, 2, 3, 1))
    pred = fmaps[-1].reshape(B, -1)                    # == torch.flatten(x, 1, -1)
    return pred, fmaps


def mpd_forward(all_weights, x, cfg):
    specs = layer_specs(cfg)
    outs, features = [], []
    for weights, period in zip(all_weights, cfg.periods):
        pred, fmap = mp_subdisc_forward(weights, specs, x, period, cfg.leaky)
        outs.append(pred)
        features.append(fmap)
    return outs, features


# ---------------------------------- main ----------------------------------- #

if __name__ == "__main__":
    cfg = Config()
    key = jax.random.PRNGKey(0)

    B, T = 2, 64
    x = jax.random.normal(jax.random.fold_in(key, 1000), (B, 1, T), jnp.float32)

    all_weights = [
        init_subdisc_params(jax.random.fold_in(key, i), cfg)
        for i in range(len(cfg.periods))
    ]

    fwd = jax.jit(lambda w, xx: mpd_forward(w, xx, cfg))
    outs, feats = fwd(all_weights, x)
    jax.block_until_ready((outs, feats))

    # light sanity checks
    assert len(outs) == len(cfg.periods)
    assert len(feats) == len(cfg.periods)
    assert all(len(f) == 6 for f in feats)             # 5 convs + conv_post
    assert all(o.shape[0] == B and o.ndim == 2 for o in outs)
    assert all(f[0].shape[-1] == p for f, p in zip(feats, cfg.periods))
    assert all(bool(jnp.isfinite(o).all()) for o in outs)
    assert all(bool(jnp.isfinite(t).all()) for f in feats for t in f)

    print("KERNEL_OK")
</pallas_src>

<mosaic_0001>
module attributes {stable_mosaic.version = 11 : i64} {
  func.func @_fused_ladder_kernel(%arg0: memref<4x32xf32, #tpu.memory_space<vmem>>, %arg1: memref<32x44xf32, #tpu.memory_space<vmem>>, %arg2: memref<1x44xf32, #tpu.memory_space<vmem>>, %arg3: memref<44x32xf32, #tpu.memory_space<vmem>>, %arg4: memref<1x32xf32, #tpu.memory_space<vmem>>, %arg5: memref<32x32xf32, #tpu.memory_space<vmem>>, %arg6: memref<1x32xf32, #tpu.memory_space<vmem>>, %arg7: memref<32x32xf32, #tpu.memory_space<vmem>>, %arg8: memref<1x32xf32, #tpu.memory_space<vmem>>, %arg9: memref<32x32xf32, #tpu.memory_space<vmem>>, %arg10: memref<1x32xf32, #tpu.memory_space<vmem>>, %arg11: memref<32x1xf32, #tpu.memory_space<vmem>>, %arg12: memref<1x1xf32, #tpu.memory_space<vmem>>, %arg13: memref<4x44xf32, #tpu.memory_space<vmem>>, %arg14: memref<4x32xf32, #tpu.memory_space<vmem>>, %arg15: memref<4x32xf32, #tpu.memory_space<vmem>>, %arg16: memref<4x32xf32, #tpu.memory_space<vmem>>, %arg17: memref<4x32xf32, #tpu.memory_space<vmem>>, %arg18: memref<4x1xf32, #tpu.memory_space<vmem>>) attributes {dimension_semantics = [], scalar_prefetch = 0 : i64, scratch_operands = 0 : i64, tpu.core_type = #tpu.core_type<tc>} {
    %c0 = arith.constant 0 : index
    %c0_0 = arith.constant 0 : index
    %0 = vector.load %arg0[%c0, %c0_0] : memref<4x32xf32, #tpu.memory_space<vmem>>, vector<4x32xf32>
    %c0_1 = arith.constant 0 : index
    %c0_2 = arith.constant 0 : index
    %1 = vector.load %arg1[%c0_1, %c0_2] : memref<32x44xf32, #tpu.memory_space<vmem>>, vector<32x44xf32>
    %cst = arith.constant dense<0.000000e+00> : vector<4x44xf32>
    %2 = tpu.matmul %0, %1, %cst {dimension_numbers = #tpu.dot_dimension_numbers<[1], [0], [0], [1], [0, 0, 1, 1], [], []>} : vector<4x32xf32>, vector<32x44xf32>, vector<4x44xf32> -> vector<4x44xf32>
    %c0_3 = arith.constant 0 : index
    %c0_4 = arith.constant 0 : index
    %3 = vector.load %arg2[%c0_3, %c0_4] : memref<1x44xf32, #tpu.memory_space<vmem>>, vector<1x44xf32>
    %4 = vector.broadcast %3 : vector<1x44xf32> to vector<4x44xf32>
    %5 = arith.addf %2, %4 : vector<4x44xf32>
    %cst_5 = arith.constant 0.000000e+00 : f32
    %6 = vector.broadcast %cst_5 : f32 to vector<4x44xf32>
    %7 = arith.cmpf ogt, %5, %6 : vector<4x44xf32>
    %cst_6 = arith.constant 1.000000e-01 : f32
    %8 = vector.broadcast %cst_6 : f32 to vector<4x44xf32>
    %9 = arith.mulf %8, %5 : vector<4x44xf32>
    %10 = arith.select %7, %5, %9 : vector<4x44xi1>, vector<4x44xf32>
    %c0_7 = arith.constant 0 : index
    %c0_8 = arith.constant 0 : index
    %11 = vector.load %arg13[%c0_7, %c0_8] : memref<4x44xf32, #tpu.memory_space<vmem>>, vector<4x44xf32>
    tpu.vector_store %arg13[%c0_7, %c0_8], %10 {strides = array<i32>} : memref<4x44xf32, #tpu.memory_space<vmem>>, vector<4x44xf32>,
    %c0_9 = arith.constant 0 : index
    %c0_10 = arith.constant 0 : index
    %12 = vector.load %arg3[%c0_9, %c0_10] : memref<44x32xf32, #tpu.memory_space<vmem>>, vector<44x32xf32>
    %cst_11 = arith.constant dense<0.000000e+00> : vector<4x32xf32>
    %13 = tpu.matmul %10, %12, %cst_11 {dimension_numbers = #tpu.dot_dimension_numbers<[1], [0], [0], [1], [0, 0, 1, 1], [], []>} : vector<4x44xf32>, vector<44x32xf32>, vector<4x32xf32> -> vector<4x32xf32>
    %c0_12 = arith.constant 0 : index
    %c0_13 = arith.constant 0 : index
    %14 = vector.load %arg4[%c0_12, %c0_13] : memref<1x32xf32, #tpu.memory_space<vmem>>, vector<1x32xf32>
    %15 = vector.broadcast %14 : vector<1x32xf32> to vector<4x32xf32>
    %16 = arith.addf %13, %15 : vector<4x32xf32>
    %cst_14 = arith.constant 0.000000e+00 : f32
    %17 = vector.broadcast %cst_14 : f32 to vector<4x32xf32>
    %18 = arith.cmpf ogt, %16, %17 : vector<4x32xf32>
    %cst_15 = arith.constant 1.000000e-01 : f32
    %19 = vector.broadcast %cst_15 : f32 to vector<4x32xf32>
    %20 = arith.mulf %19, %16 : vector<4x32xf32>
    %21 = arith.select %18, %16, %20 : vector<4x32xi1>, vector<4x32xf32>
    %c0_16 = arith.constant 0 : index
    %c0_17 = arith.constant 0 : index
    %22 = vector.load %arg14[%c0_16, %c0_17] : memref<4x32xf32, #tpu.memory_space<vmem>>, vector<4x32xf32>
    tpu.vector_store %arg14[%c0_16, %c0_17], %21 {strides = array<i32>} : memref<4x32xf32, #tpu.memory_space<vmem>>, vector<4x32xf32>,
    %c0_18 = arith.constant 0 : index
    %c0_19 = arith.constant 0 : index
    %23 = vector.load %arg5[%c0_18, %c0_19] : memref<32x32xf32, #tpu.memory_space<vmem>>, vector<32x32xf32>
    %cst_20 = arith.constant dense<0.000000e+00> : vector<4x32xf32>
    %24 = tpu.matmul %21, %23, %cst_20 {dimension_numbers = #tpu.dot_dimension_numbers<[1], [0], [0], [1], [0, 0, 1, 1], [], []>} : vector<4x32xf32>, vector<32x32xf32>, vector<4x32xf32> -> vector<4x32xf32>
    %c0_21 = arith.constant 0 : index
    %c0_22 = arith.constant 0 : index
    %25 = vector.load %arg6[%c0_21, %c0_22] : memref<1x32xf32, #tpu.memory_space<vmem>>, vector<1x32xf32>
    %26 = vector.broadcast %25 : vector<1x32xf32> to vector<4x32xf32>
    %27 = arith.addf %24, %26 : vector<4x32xf32>
    %cst_23 = arith.constant 0.000000e+00 : f32
    %28 = vector.broadcast %cst_23 : f32 to vector<4x32xf32>
    %29 = arith.cmpf ogt, %27, %28 : vector<4x32xf32>
    %cst_24 = arith.constant 1.000000e-01 : f32
    %30 = vector.broadcast %cst_24 : f32 to vector<4x32xf32>
    %31 = arith.mulf %30, %27 : vector<4x32xf32>
    %32 = arith.select %29, %27, %31 : vector<4x32xi1>, vector<4x32xf32>
    %c0_25 = arith.constant 0 : index
    %c0_26 = arith.constant 0 : index
    %33 = vector.load %arg15[%c0_25, %c0_26] : memref<4x32xf32, #tpu.memory_space<vmem>>, vector<4x32xf32>
    tpu.vector_store %arg15[%c0_25, %c0_26], %32 {strides = array<i32>} : memref<4x32xf32, #tpu.memory_space<vmem>>, vector<4x32xf32>,
    %c0_27 = arith.constant 0 : index
    %c0_28 = arith.constant 0 : index
    %34 = vector.load %arg7[%c0_27, %c0_28] : memref<32x32xf32, #tpu.memory_space<vmem>>, vector<32x32xf32>
    %cst_29 = arith.constant dense<0.000000e+00> : vector<4x32xf32>
    %35 = tpu.matmul %32, %34, %cst_29 {dimension_numbers = #tpu.dot_dimension_numbers<[1], [0], [0], [1], [0, 0, 1, 1], [], []>} : vector<4x32xf32>, vector<32x32xf32>, vector<4x32xf32> -> vector<4x32xf32>
    %c0_30 = arith.constant 0 : index
    %c0_31 = arith.constant 0 : index
    %36 = vector.load %arg8[%c0_30, %c0_31] : memref<1x32xf32, #tpu.memory_space<vmem>>, vector<1x32xf32>
    %37 = vector.broadcast %36 : vector<1x32xf32> to vector<4x32xf32>
    %38 = arith.addf %35, %37 : vector<4x32xf32>
    %cst_32 = arith.constant 0.000000e+00 : f32
    %39 = vector.broadcast %cst_32 : f32 to vector<4x32xf32>
    %40 = arith.cmpf ogt, %38, %39 : vector<4x32xf32>
    %cst_33 = arith.constant 1.000000e-01 : f32
    %41 = vector.broadcast %cst_33 : f32 to vector<4x32xf32>
    %42 = arith.mulf %41, %38 : vector<4x32xf32>
    %43 = arith.select %40, %38, %42 : vector<4x32xi1>, vector<4x32xf32>
    %c0_34 = arith.constant 0 : index
    %c0_35 = arith.constant 0 : index
    %44 = vector.load %arg16[%c0_34, %c0_35] : memref<4x32xf32, #tpu.memory_space<vmem>>, vector<4x32xf32>
    tpu.vector_store %arg16[%c0_34, %c0_35], %43 {strides = array<i32>} : memref<4x32xf32, #tpu.memory_space<vmem>>, vector<4x32xf32>,
    %c0_36 = arith.constant 0 : index
    %c0_37 = arith.constant 0 : index
    %45 = vector.load %arg9[%c0_36, %c0_37] : memref<32x32xf32, #tpu.memory_space<vmem>>, vector<32x32xf32>
    %cst_38 = arith.constant dense<0.000000e+00> : vector<4x32xf32>
    %46 = tpu.matmul %43, %45, %cst_38 {dimension_numbers = #tpu.dot_dimension_numbers<[1], [0], [0], [1], [0, 0, 1, 1], [], []>} : vector<4x32xf32>, vector<32x32xf32>, vector<4x32xf32> -> vector<4x32xf32>
    %c0_39 = arith.constant 0 : index
    %c0_40 = arith.constant 0 : index
    %47 = vector.load %arg10[%c0_39, %c0_40] : memref<1x32xf32, #tpu.memory_space<vmem>>, vector<1x32xf32>
    %48 = vector.broadcast %47 : vector<1x32xf32> to vector<4x32xf32>
    %49 = arith.addf %46, %48 : vector<4x32xf32>
    %cst_41 = arith.constant 0.000000e+00 : f32
    %50 = vector.broadcast %cst_41 : f32 to vector<4x32xf32>
    %51 = arith.cmpf ogt, %49, %50 : vector<4x32xf32>
    %cst_42 = arith.constant 1.000000e-01 : f32
    %52 = vector.broadcast %cst_42 : f32 to vector<4x32xf32>
    %53 = arith.mulf %52, %49 : vector<4x32xf32>
    %54 = arith.select %51, %49, %53 : vector<4x32xi1>, vector<4x32xf32>
    %c0_43 = arith.constant 0 : index
    %c0_44 = arith.constant 0 : index
    %55 = vector.load %arg17[%c0_43, %c0_44] : memref<4x32xf32, #tpu.memory_space<vmem>>, vector<4x32xf32>
    tpu.vector_store %arg17[%c0_43, %c0_44], %54 {strides = array<i32>} : memref<4x32xf32, #tpu.memory_space<vmem>>, vector<4x32xf32>,
    %c0_45 = arith.constant 0 : index
    %c0_46 = arith.constant 0 : index
    %56 = vector.load %arg11[%c0_45, %c0_46] : memref<32x1xf32, #tpu.memory_space<vmem>>, vector<32x1xf32>
    %cst_47 = arith.constant dense<0.000000e+00> : vector<4x1xf32>
    %57 = tpu.matmul %54, %56, %cst_47 {dimension_numbers = #tpu.dot_dimension_numbers<[1], [0], [0], [1], [0, 0, 1, 1], [], []>} : vector<4x32xf32>, vector<32x1xf32>, vector<4x1xf32> -> vector<4x1xf32>
    %c0_48 = arith.constant 0 : index
    %c0_49 = arith.constant 0 : index
    %58 = vector.load %arg12[%c0_48, %c0_49] : memref<1x1xf32, #tpu.memory_space<vmem>>, vector<1x1xf32>
    %59 = vector.broadcast %58 : vector<1x1xf32> to vector<4x1xf32>
    %60 = arith.addf %57, %59 : vector<4x1xf32>
    %c0_50 = arith.constant 0 : index
    %c0_51 = arith.constant 0 : index
    %61 = vector.load %arg18[%c0_50, %c0_51] : memref<4x1xf32, #tpu.memory_space<vmem>>, vector<4x1xf32>
    tpu.vector_store %arg18[%c0_50, %c0_51], %60 {strides = array<i32>} : memref<4x1xf32, #tpu.memory_space<vmem>>, vector<4x1xf32>,
    return
  }
}

module attributes {stable_mosaic.version = 11 : i64} {
  func.func @_fused_ladder_kernel(%arg0: memref<6x22xf32, #tpu.memory_space<vmem>>, %arg1: memref<22x32xf32, #tpu.memory_space<vmem>>, %arg2: memref<1x32xf32, #tpu.memory_space<vmem>>, %arg3: memref<32x24xf32, #tpu.memory_space<vmem>>, %arg4: memref<1x24xf32, #tpu.memory_space<vmem>>, %arg5: memref<24x16xf32, #tpu.memory_space<vmem>>, %arg6: memref<1x16xf32, #tpu.memory_space<vmem>>, %arg7: memref<16x32xf32, #tpu.memory_space<vmem>>, %arg8: memref<1x32xf32, #tpu.memory_space<vmem>>, %arg9: memref<32x32xf32, #tpu.memory_space<vmem>>, %arg10: memref<1x32xf32, #tpu.memory_space<vmem>>, %arg11: memref<32x1xf32, #tpu.memory_space<vmem>>, %arg12: memref<1x1xf32, #tpu.memory_space<vmem>>, %arg13: memref<6x32xf32, #tpu.memory_space<vmem>>, %arg14: memref<6x24xf32, #tpu.memory_space<vmem>>, %arg15: memref<6x16xf32, #tpu.memory_space<vmem>>, %arg16: memref<6x32xf32, #tpu.memory_space<vmem>>, %arg17: memref<6x32xf32, #tpu.memory_space<vmem>>, %arg18: memref<6x1xf32, #tpu.memory_space<vmem>>) attributes {dimension_semantics = [], scalar_prefetch = 0 : i64, scratch_operands = 0 : i64, tpu.core_type = #tpu.core_type<tc>} {
    %c0 = arith.constant 0 : index
    %c0_0 = arith.constant 0 : index
    %0 = vector.load %arg0[%c0, %c0_0] : memref<6x22xf32, #tpu.memory_space<vmem>>, vector<6x22xf32>
    %c0_1 = arith.constant 0 : index
    %c0_2 = arith.constant 0 : index
    %1 = vector.load %arg1[%c0_1, %c0_2] : memref<22x32xf32, #tpu.memory_space<vmem>>, vector<22x32xf32>
    %cst = arith.constant dense<0.000000e+00> : vector<6x32xf32>
    %2 = tpu.matmul %0, %1, %cst {dimension_numbers = #tpu.dot_dimension_numbers<[1], [0], [0], [1], [0, 0, 1, 1], [], []>} : vector<6x22xf32>, vector<22x32xf32>, vector<6x32xf32> -> vector<6x32xf32>
    %c0_3 = arith.constant 0 : index
    %c0_4 = arith.constant 0 : index
    %3 = vector.load %arg2[%c0_3, %c0_4] : memref<1x32xf32, #tpu.memory_space<vmem>>, vector<1x32xf32>
    %4 = vector.broadcast %3 : vector<1x32xf32> to vector<6x32xf32>
    %5 = arith.addf %2, %4 : vector<6x32xf32>
    %cst_5 = arith.constant 0.000000e+00 : f32
    %6 = vector.broadcast %cst_5 : f32 to vector<6x32xf32>
    %7 = arith.cmpf ogt, %5, %6 : vector<6x32xf32>
    %cst_6 = arith.constant 1.000000e-01 : f32
    %8 = vector.broadcast %cst_6 : f32 to vector<6x32xf32>
    %9 = arith.mulf %8, %5 : vector<6x32xf32>
    %10 = arith.select %7, %5, %9 : vector<6x32xi1>, vector<6x32xf32>
    %c0_7 = arith.constant 0 : index
    %c0_8 = arith.constant 0 : index
    %11 = vector.load %arg13[%c0_7, %c0_8] : memref<6x32xf32, #tpu.memory_space<vmem>>, vector<6x32xf32>
    tpu.vector_store %arg13[%c0_7, %c0_8], %10 {strides = array<i32>} : memref<6x32xf32, #tpu.memory_space<vmem>>, vector<6x32xf32>,
    %c0_9 = arith.constant 0 : index
    %c0_10 = arith.constant 0 : index
    %12 = vector.load %arg3[%c0_9, %c0_10] : memref<32x24xf32, #tpu.memory_space<vmem>>, vector<32x24xf32>
    %cst_11 = arith.constant dense<0.000000e+00> : vector<6x24xf32>
    %13 = tpu.matmul %10, %12, %cst_11 {dimension_numbers = #tpu.dot_dimension_numbers<[1], [0], [0], [1], [0, 0, 1, 1], [], []>} : vector<6x32xf32>, vector<32x24xf32>, vector<6x24xf32> -> vector<6x24xf32>
    %c0_12 = arith.constant 0 : index
    %c0_13 = arith.constant 0 : index
    %14 = vector.load %arg4[%c0_12, %c0_13] : memref<1x24xf32, #tpu.memory_space<vmem>>, vector<1x24xf32>
    %15 = vector.broadcast %14 : vector<1x24xf32> to vector<6x24xf32>
    %16 = arith.addf %13, %15 : vector<6x24xf32>
    %cst_14 = arith.constant 0.000000e+00 : f32
    %17 = vector.broadcast %cst_14 : f32 to vector<6x24xf32>
    %18 = arith.cmpf ogt, %16, %17 : vector<6x24xf32>
    %cst_15 = arith.constant 1.000000e-01 : f32
    %19 = vector.broadcast %cst_15 : f32 to vector<6x24xf32>
    %20 = arith.mulf %19, %16 : vector<6x24xf32>
    %21 = arith.select %18, %16, %20 : vector<6x24xi1>, vector<6x24xf32>
    %c0_16 = arith.constant 0 : index
    %c0_17 = arith.constant 0 : index
    %22 = vector.load %arg14[%c0_16, %c0_17] : memref<6x24xf32, #tpu.memory_space<vmem>>, vector<6x24xf32>
    tpu.vector_store %arg14[%c0_16, %c0_17], %21 {strides = array<i32>} : memref<6x24xf32, #tpu.memory_space<vmem>>, vector<6x24xf32>,
    %c0_18 = arith.constant 0 : index
    %c0_19 = arith.constant 0 : index
    %23 = vector.load %arg5[%c0_18, %c0_19] : memref<24x16xf32, #tpu.memory_space<vmem>>, vector<24x16xf32>
    %cst_20 = arith.constant dense<0.000000e+00> : vector<6x16xf32>
    %24 = tpu.matmul %21, %23, %cst_20 {dimension_numbers = #tpu.dot_dimension_numbers<[1], [0], [0], [1], [0, 0, 1, 1], [], []>} : vector<6x24xf32>, vector<24x16xf32>, vector<6x16xf32> -> vector<6x16xf32>
    %c0_21 = arith.constant 0 : index
    %c0_22 = arith.constant 0 : index
    %25 = vector.load %arg6[%c0_21, %c0_22] : memref<1x16xf32, #tpu.memory_space<vmem>>, vector<1x16xf32>
    %26 = vector.broadcast %25 : vector<1x16xf32> to vector<6x16xf32>
    %27 = arith.addf %24, %26 : vector<6x16xf32>
    %cst_23 = arith.constant 0.000000e+00 : f32
    %28 = vector.broadcast %cst_23 : f32 to vector<6x16xf32>
    %29 = arith.cmpf ogt, %27, %28 : vector<6x16xf32>
    %cst_24 = arith.constant 1.000000e-01 : f32
    %30 = vector.broadcast %cst_24 : f32 to vector<6x16xf32>
    %31 = arith.mulf %30, %27 : vector<6x16xf32>
    %32 = arith.select %29, %27, %31 : vector<6x16xi1>, vector<6x16xf32>
    %c0_25 = arith.constant 0 : index
    %c0_26 = arith.constant 0 : index
    %33 = vector.load %arg15[%c0_25, %c0_26] : memref<6x16xf32, #tpu.memory_space<vmem>>, vector<6x16xf32>
    tpu.vector_store %arg15[%c0_25, %c0_26], %32 {strides = array<i32>} : memref<6x16xf32, #tpu.memory_space<vmem>>, vector<6x16xf32>,
    %c0_27 = arith.constant 0 : index
    %c0_28 = arith.constant 0 : index
    %34 = vector.load %arg7[%c0_27, %c0_28] : memref<16x32xf32, #tpu.memory_space<vmem>>, vector<16x32xf32>
    %cst_29 = arith.constant dense<0.000000e+00> : vector<6x32xf32>
    %35 = tpu.matmul %32, %34, %cst_29 {dimension_numbers = #tpu.dot_dimension_numbers<[1], [0], [0], [1], [0, 0, 1, 1], [], []>} : vector<6x16xf32>, vector<16x32xf32>, vector<6x32xf32> -> vector<6x32xf32>
    %c0_30 = arith.constant 0 : index
    %c0_31 = arith.constant 0 : index
    %36 = vector.load %arg8[%c0_30, %c0_31] : memref<1x32xf32, #tpu.memory_space<vmem>>, vector<1x32xf32>
    %37 = vector.broadcast %36 : vector<1x32xf32> to vector<6x32xf32>
    %38 = arith.addf %35, %37 : vector<6x32xf32>
    %cst_32 = arith.constant 0.000000e+00 : f32
    %39 = vector.broadcast %cst_32 : f32 to vector<6x32xf32>
    %40 = arith.cmpf ogt, %38, %39 : vector<6x32xf32>
    %cst_33 = arith.constant 1.000000e-01 : f32
    %41 = vector.broadcast %cst_33 : f32 to vector<6x32xf32>
    %42 = arith.mulf %41, %38 : vector<6x32xf32>
    %43 = arith.select %40, %38, %42 : vector<6x32xi1>, vector<6x32xf32>
    %c0_34 = arith.constant 0 : index
    %c0_35 = arith.constant 0 : index
    %44 = vector.load %arg16[%c0_34, %c0_35] : memref<6x32xf32, #tpu.memory_space<vmem>>, vector<6x32xf32>
    tpu.vector_store %arg16[%c0_34, %c0_35], %43 {strides = array<i32>} : memref<6x32xf32, #tpu.memory_space<vmem>>, vector<6x32xf32>,
    %c0_36 = arith.constant 0 : index
    %c0_37 = arith.constant 0 : index
    %45 = vector.load %arg9[%c0_36, %c0_37] : memref<32x32xf32, #tpu.memory_space<vmem>>, vector<32x32xf32>
    %cst_38 = arith.constant dense<0.000000e+00> : vector<6x32xf32>
    %46 = tpu.matmul %43, %45, %cst_38 {dimension_numbers = #tpu.dot_dimension_numbers<[1], [0], [0], [1], [0, 0, 1, 1], [], []>} : vector<6x32xf32>, vector<32x32xf32>, vector<6x32xf32> -> vector<6x32xf32>
    %c0_39 = arith.constant 0 : index
    %c0_40 = arith.constant 0 : index
    %47 = vector.load %arg10[%c0_39, %c0_40] : memref<1x32xf32, #tpu.memory_space<vmem>>, vector<1x32xf32>
    %48 = vector.broadcast %47 : vector<1x32xf32> to vector<6x32xf32>
    %49 = arith.addf %46, %48 : vector<6x32xf32>
    %cst_41 = arith.constant 0.000000e+00 : f32
    %50 = vector.broadcast %cst_41 : f32 to vector<6x32xf32>
    %51 = arith.cmpf ogt, %49, %50 : vector<6x32xf32>
    %cst_42 = arith.constant 1.000000e-01 : f32
    %52 = vector.broadcast %cst_42 : f32 to vector<6x32xf32>
    %53 = arith.mulf %52, %49 : vector<6x32xf32>
    %54 = arith.select %51, %49, %53 : vector<6x32xi1>, vector<6x32xf32>
    %c0_43 = arith.constant 0 : index
    %c0_44 = arith.constant 0 : index
    %55 = vector.load %arg17[%c0_43, %c0_44] : memref<6x32xf32, #tpu.memory_space<vmem>>, vector<6x32xf32>
    tpu.vector_store %arg17[%c0_43, %c0_44], %54 {strides = array<i32>} : memref<6x32xf32, #tpu.memory_space<vmem>>, vector<6x32xf32>,
    %c0_45 = arith.constant 0 : index
    %c0_46 = arith.constant 0 : index
    %56 = vector.load %arg11[%c0_45, %c0_46] : memref<32x1xf32, #tpu.memory_space<vmem>>, vector<32x1xf32>
    %cst_47 = arith.constant dense<0.000000e+00> : vector<6x1xf32>
    %57 = tpu.matmul %54, %56, %cst_47 {dimension_numbers = #tpu.dot_dimension_numbers<[1], [0], [0], [1], [0, 0, 1, 1], [], []>} : vector<6x32xf32>, vector<32x1xf32>, vector<6x1xf32> -> vector<6x1xf32>
    %c0_48 = arith.constant 0 : index
    %c0_49 = arith.constant 0 : index
    %58 = vector.load %arg12[%c0_48, %c0_49] : memref<1x1xf32, #tpu.memory_space<vmem>>, vector<1x1xf32>
    %59 = vector.broadcast %58 : vector<1x1xf32> to vector<6x1xf32>
    %60 = arith.addf %57, %59 : vector<6x1xf32>
    %c0_50 = arith.constant 0 : index
    %c0_51 = arith.constant 0 : index
    %61 = vector.load %arg18[%c0_50, %c0_51] : memref<6x1xf32, #tpu.memory_space<vmem>>, vector<6x1xf32>
    tpu.vector_store %arg18[%c0_50, %c0_51], %60 {strides = array<i32>} : memref<6x1xf32, #tpu.memory_space<vmem>>, vector<6x1xf32>,
    return
  }
}

module attributes {stable_mosaic.version = 11 : i64} {
  func.func @_fused_ladder_kernel(%arg0: memref<10x13xf32, #tpu.memory_space<vmem>>, %arg1: memref<13x20xf32, #tpu.memory_space<vmem>>, %arg2: memref<1x20xf32, #tpu.memory_space<vmem>>, %arg3: memref<20x16xf32, #tpu.memory_space<vmem>>, %arg4: memref<1x16xf32, #tpu.memory_space<vmem>>, %arg5: memref<16x16xf32, #tpu.memory_space<vmem>>, %arg6: memref<1x16xf32, #tpu.memory_space<vmem>>, %arg7: memref<16x32xf32, #tpu.memory_space<vmem>>, %arg8: memref<1x32xf32, #tpu.memory_space<vmem>>, %arg9: memref<32x32xf32, #tpu.memory_space<vmem>>, %arg10: memref<1x32xf32, #tpu.memory_space<vmem>>, %arg11: memref<32x1xf32, #tpu.memory_space<vmem>>, %arg12: memref<1x1xf32, #tpu.memory_space<vmem>>, %arg13: memref<10x20xf32, #tpu.memory_space<vmem>>, %arg14: memref<10x16xf32, #tpu.memory_space<vmem>>, %arg15: memref<10x16xf32, #tpu.memory_space<vmem>>, %arg16: memref<10x32xf32, #tpu.memory_space<vmem>>, %arg17: memref<10x32xf32, #tpu.memory_space<vmem>>, %arg18: memref<10x1xf32, #tpu.memory_space<vmem>>) attributes {dimension_semantics = [], scalar_prefetch = 0 : i64, scratch_operands = 0 : i64, tpu.core_type = #tpu.core_type<tc>} {
    %c0 = arith.constant 0 : index
    %c0_0 = arith.constant 0 : index
    %0 = vector.load %arg0[%c0, %c0_0] : memref<10x13xf32, #tpu.memory_space<vmem>>, vector<10x13xf32>
    %c0_1 = arith.constant 0 : index
    %c0_2 = arith.constant 0 : index
    %1 = vector.load %arg1[%c0_1, %c0_2] : memref<13x20xf32, #tpu.memory_space<vmem>>, vector<13x20xf32>
    %cst = arith.constant dense<0.000000e+00> : vector<10x20xf32>
    %2 = tpu.matmul %0, %1, %cst {dimension_numbers = #tpu.dot_dimension_numbers<[1], [0], [0], [1], [0, 0, 1, 1], [], []>} : vector<10x13xf32>, vector<13x20xf32>, vector<10x20xf32> -> vector<10x20xf32>
    %c0_3 = arith.constant 0 : index
    %c0_4 = arith.constant 0 : index
    %3 = vector.load %arg2[%c0_3, %c0_4] : memref<1x20xf32, #tpu.memory_space<vmem>>, vector<1x20xf32>
    %4 = vector.broadcast %3 : vector<1x20xf32> to vector<10x20xf32>
    %5 = arith.addf %2, %4 : vector<10x20xf32>
    %cst_5 = arith.constant 0.000000e+00 : f32
    %6 = vector.broadcast %cst_5 : f32 to vector<10x20xf32>
    %7 = arith.cmpf ogt, %5, %6 : vector<10x20xf32>
    %cst_6 = arith.constant 1.000000e-01 : f32
    %8 = vector.broadcast %cst_6 : f32 to vector<10x20xf32>
    %9 = arith.mulf %8, %5 : vector<10x20xf32>
    %10 = arith.select %7, %5, %9 : vector<10x20xi1>, vector<10x20xf32>
    %c0_7 = arith.constant 0 : index
    %c0_8 = arith.constant 0 : index
    %11 = vector.load %arg13[%c0_7, %c0_8] : memref<10x20xf32, #tpu.memory_space<vmem>>, vector<10x20xf32>
    tpu.vector_store %arg13[%c0_7, %c0_8], %10 {strides = array<i32>} : memref<10x20xf32, #tpu.memory_space<vmem>>, vector<10x20xf32>,
    %c0_9 = arith.constant 0 : index
    %c0_10 = arith.constant 0 : index
    %12 = vector.load %arg3[%c0_9, %c0_10] : memref<20x16xf32, #tpu.memory_space<vmem>>, vector<20x16xf32>
    %cst_11 = arith.constant dense<0.000000e+00> : vector<10x16xf32>
    %13 = tpu.matmul %10, %12, %cst_11 {dimension_numbers = #tpu.dot_dimension_numbers<[1], [0], [0], [1], [0, 0, 1, 1], [], []>} : vector<10x20xf32>, vector<20x16xf32>, vector<10x16xf32> -> vector<10x16xf32>
    %c0_12 = arith.constant 0 : index
    %c0_13 = arith.constant 0 : index
    %14 = vector.load %arg4[%c0_12, %c0_13] : memref<1x16xf32, #tpu.memory_space<vmem>>, vector<1x16xf32>
    %15 = vector.broadcast %14 : vector<1x16xf32> to vector<10x16xf32>
    %16 = arith.addf %13, %15 : vector<10x16xf32>
    %cst_14 = arith.constant 0.000000e+00 : f32
    %17 = vector.broadcast %cst_14 : f32 to vector<10x16xf32>
    %18 = arith.cmpf ogt, %16, %17 : vector<10x16xf32>
    %cst_15 = arith.constant 1.000000e-01 : f32
    %19 = vector.broadcast %cst_15 : f32 to vector<10x16xf32>
    %20 = arith.mulf %19, %16 : vector<10x16xf32>
    %21 = arith.select %18, %16, %20 : vector<10x16xi1>, vector<10x16xf32>
    %c0_16 = arith.constant 0 : index
    %c0_17 = arith.constant 0 : index
    %22 = vector.load %arg14[%c0_16, %c0_17] : memref<10x16xf32, #tpu.memory_space<vmem>>, vector<10x16xf32>
    tpu.vector_store %arg14[%c0_16, %c0_17], %21 {strides = array<i32>} : memref<10x16xf32, #tpu.memory_space<vmem>>, vector<10x16xf32>,
    %c0_18 = arith.constant 0 : index
    %c0_19 = arith.constant 0 : index
    %23 = vector.load %arg5[%c0_18, %c0_19] : memref<16x16xf32, #tpu.memory_space<vmem>>, vector<16x16xf32>
    %cst_20 = arith.constant dense<0.000000e+00> : vector<10x16xf32>
    %24 = tpu.matmul %21, %23, %cst_20 {dimension_numbers = #tpu.dot_dimension_numbers<[1], [0], [0], [1], [0, 0, 1, 1], [], []>} : vector<10x16xf32>, vector<16x16xf32>, vector<10x16xf32> -> vector<10x16xf32>
    %c0_21 = arith.constant 0 : index
    %c0_22 = arith.constant 0 : index
    %25 = vector.load %arg6[%c0_21, %c0_22] : memref<1x16xf32, #tpu.memory_space<vmem>>, vector<1x16xf32>
    %26 = vector.broadcast %25 : vector<1x16xf32> to vector<10x16xf32>
    %27 = arith.addf %24, %26 : vector<10x16xf32>
    %cst_23 = arith.constant 0.000000e+00 : f32
    %28 = vector.broadcast %cst_23 : f32 to vector<10x16xf32>
    %29 = arith.cmpf ogt, %27, %28 : vector<10x16xf32>
    %cst_24 = arith.constant 1.000000e-01 : f32
    %30 = vector.broadcast %cst_24 : f32 to vector<10x16xf32>
    %31 = arith.mulf %30, %27 : vector<10x16xf32>
    %32 = arith.select %29, %27, %31 : vector<10x16xi1>, vector<10x16xf32>
    %c0_25 = arith.constant 0 : index
    %c0_26 = arith.constant 0 : index
    %33 = vector.load %arg15[%c0_25, %c0_26] : memref<10x16xf32, #tpu.memory_space<vmem>>, vector<10x16xf32>
    tpu.vector_store %arg15[%c0_25, %c0_26], %32 {strides = array<i32>} : memref<10x16xf32, #tpu.memory_space<vmem>>, vector<10x16xf32>,
    %c0_27 = arith.constant 0 : index
    %c0_28 = arith.constant 0 : index
    %34 = vector.load %arg7[%c0_27, %c0_28] : memref<16x32xf32, #tpu.memory_space<vmem>>, vector<16x32xf32>
    %cst_29 = arith.constant dense<0.000000e+00> : vector<10x32xf32>
    %35 = tpu.matmul %32, %34, %cst_29 {dimension_numbers = #tpu.dot_dimension_numbers<[1], [0], [0], [1], [0, 0, 1, 1], [], []>} : vector<10x16xf32>, vector<16x32xf32>, vector<10x32xf32> -> vector<10x32xf32>
    %c0_30 = arith.constant 0 : index
    %c0_31 = arith.constant 0 : index
    %36 = vector.load %arg8[%c0_30, %c0_31] : memref<1x32xf32, #tpu.memory_space<vmem>>, vector<1x32xf32>
    %37 = vector.broadcast %36 : vector<1x32xf32> to vector<10x32xf32>
    %38 = arith.addf %35, %37 : vector<10x32xf32>
    %cst_32 = arith.constant 0.000000e+00 : f32
    %39 = vector.broadcast %cst_32 : f32 to vector<10x32xf32>
    %40 = arith.cmpf ogt, %38, %39 : vector<10x32xf32>
    %cst_33 = arith.constant 1.000000e-01 : f32
    %41 = vector.broadcast %cst_33 : f32 to vector<10x32xf32>
    %42 = arith.mulf %41, %38 : vector<10x32xf32>
    %43 = arith.select %40, %38, %42 : vector<10x32xi1>, vector<10x32xf32>
    %c0_34 = arith.constant 0 : index
    %c0_35 = arith.constant 0 : index
    %44 = vector.load %arg16[%c0_34, %c0_35] : memref<10x32xf32, #tpu.memory_space<vmem>>, vector<10x32xf32>
    tpu.vector_store %arg16[%c0_34, %c0_35], %43 {strides = array<i32>} : memref<10x32xf32, #tpu.memory_space<vmem>>, vector<10x32xf32>,
    %c0_36 = arith.constant 0 : index
    %c0_37 = arith.constant 0 : index
    %45 = vector.load %arg9[%c0_36, %c0_37] : memref<32x32xf32, #tpu.memory_space<vmem>>, vector<32x32xf32>
    %cst_38 = arith.constant dense<0.000000e+00> : vector<10x32xf32>
    %46 = tpu.matmul %43, %45, %cst_38 {dimension_numbers = #tpu.dot_dimension_numbers<[1], [0], [0], [1], [0, 0, 1, 1], [], []>} : vector<10x32xf32>, vector<32x32xf32>, vector<10x32xf32> -> vector<10x32xf32>
    %c0_39 = arith.constant 0 : index
    %c0_40 = arith.constant 0 : index
    %47 = vector.load %arg10[%c0_39, %c0_40] : memref<1x32xf32, #tpu.memory_space<vmem>>, vector<1x32xf32>
    %48 = vector.broadcast %47 : vector<1x32xf32> to vector<10x32xf32>
    %49 = arith.addf %46, %48 : vector<10x32xf32>
    %cst_41 = arith.constant 0.000000e+00 : f32
    %50 = vector.broadcast %cst_41 : f32 to vector<10x32xf32>
    %51 = arith.cmpf ogt, %49, %50 : vector<10x32xf32>
    %cst_42 = arith.constant 1.000000e-01 : f32
    %52 = vector.broadcast %cst_42 : f32 to vector<10x32xf32>
    %53 = arith.mulf %52, %49 : vector<10x32xf32>
    %54 = arith.select %51, %49, %53 : vector<10x32xi1>, vector<10x32xf32>
    %c0_43 = arith.constant 0 : index
    %c0_44 = arith.constant 0 : index
    %55 = vector.load %arg17[%c0_43, %c0_44] : memref<10x32xf32, #tpu.memory_space<vmem>>, vector<10x32xf32>
    tpu.vector_store %arg17[%c0_43, %c0_44], %54 {strides = array<i32>} : memref<10x32xf32, #tpu.memory_space<vmem>>, vector<10x32xf32>,
    %c0_45 = arith.constant 0 : index
    %c0_46 = arith.constant 0 : index
    %56 = vector.load %arg11[%c0_45, %c0_46] : memref<32x1xf32, #tpu.memory_space<vmem>>, vector<32x1xf32>
    %cst_47 = arith.constant dense<0.000000e+00> : vector<10x1xf32>
    %57 = tpu.matmul %54, %56, %cst_47 {dimension_numbers = #tpu.dot_dimension_numbers<[1], [0], [0], [1], [0, 0, 1, 1], [], []>} : vector<10x32xf32>, vector<32x1xf32>, vector<10x1xf32> -> vector<10x1xf32>
    %c0_48 = arith.constant 0 : index
    %c0_49 = arith.constant 0 : index
    %58 = vector.load %arg12[%c0_48, %c0_49] : memref<1x1xf32, #tpu.memory_space<vmem>>, vector<1x1xf32>
    %59 = vector.broadcast %58 : vector<1x1xf32> to vector<10x1xf32>
    %60 = arith.addf %57, %59 : vector<10x1xf32>
    %c0_50 = arith.constant 0 : index
    %c0_51 = arith.constant 0 : index
    %61 = vector.load %arg18[%c0_50, %c0_51] : memref<10x1xf32, #tpu.memory_space<vmem>>, vector<10x1xf32>
    tpu.vector_store %arg18[%c0_50, %c0_51], %60 {strides = array<i32>} : memref<10x1xf32, #tpu.memory_space<vmem>>, vector<10x1xf32>,
    return
  }
}

</mosaic_0001>

<llo_original>
// kernel: _lambda_.3
$region0: #{_lambda_.3}
  #allocation0 [shape = 'u32[]', space=smem, size = 0x4, offset = 0x4, fixed_abs, tag = 'smem constant byte address 0x4 - core index']
  #allocation1 [shape = 'u32[144,128]{1,0:T(1,128)}', space=vmem, size = 0x12000, scoped, tag = 'internal scratch']
  #allocation2 [shape = 'f32[1,1]{1,0:T(1,128)S(1)}', space=vmem, size = 0x200, scoped, tag = 'scoped memory for _lambda_.3']
  %s0 = inlined_call_operand.vmem [shape: f32[4,32], index: 0, kind: input, shape index: {}]
  %s1 = inlined_call_operand.vmem [shape: f32[32,44], index: 1, kind: input, shape index: {}]
  %s2 = inlined_call_operand.vmem [shape: f32[1,44], index: 2, kind: input, shape index: {}]
  %s3 = inlined_call_operand.vmem [shape: f32[44,32], index: 3, kind: input, shape index: {}]
  %s4 = inlined_call_operand.vmem [shape: f32[1,32], index: 4, kind: input, shape index: {}]
  %s5 = inlined_call_operand.vmem [shape: f32[32,32], index: 5, kind: input, shape index: {}]
  %s6 = inlined_call_operand.vmem [shape: f32[1,32], index: 6, kind: input, shape index: {}]
  %s7 = inlined_call_operand.vmem [shape: f32[32,32], index: 7, kind: input, shape index: {}]
  %s8 = inlined_call_operand.vmem [shape: f32[1,32], index: 8, kind: input, shape index: {}]
  %s9 = inlined_call_operand.vmem [shape: f32[32,32], index: 9, kind: input, shape index: {}]
  %s10 = inlined_call_operand.vmem [shape: f32[1,32], index: 10, kind: input, shape index: {}]
  %s11 = inlined_call_operand.vmem [shape: f32[32,1], index: 11, kind: input, shape index: {}]
  %s12 = inlined_call_operand.<no memory space> [shape: f32[1,1], index: 12, kind: input, shape index: {}]
  %s13 = inlined_call_operand.vmem [shape: f32[4,44], index: 13, kind: output, shape index: {0}]
  %s14 = inlined_call_operand.vmem [shape: f32[4,32], index: 14, kind: output, shape index: {1}]
  %s15 = inlined_call_operand.vmem [shape: f32[4,32], index: 15, kind: output, shape index: {2}]
  %s16 = inlined_call_operand.hbm [shape: f32[4,32], index: 16, kind: output, shape index: {3}]
  %s17 = inlined_call_operand.hbm [shape: f32[4,32], index: 17, kind: output, shape index: {4}]
  %s18 = inlined_call_operand.vmem [shape: f32[4,1], index: 18, kind: output, shape index: {5}]
  %19 = xla_tuple %s13, %s14, %s15, %s16, %s17, %s18
  %s20 = sld [smem:[#allocation0]]
  $region102: #{_lambda_.3} parent=0
    _
  %s22 = ssub.s32 1, %s20
  %s23 = scalar_select 0, %s22, %s20
  %v24 = vstv %s12
  %25 = vst [vmem:[#allocation2] sm:$0x1] %v24
  $region1: #{_lambda_.3} parent=0
    #allocation3 [shape = 'u8[2048]{0}', space=vmem, size = 0x800, scoped, tag = 'output window, operand 3, single buffered']
    #allocation4 [shape = 's32[1]{0}', space=sflag, size = 0x4, scoped, tag = 'scoped memory for _lambda_.3']
    #allocation5 [shape = 'u8[2048]{0}', space=vmem, size = 0x800, scoped, tag = 'output window, operand 4, single buffered']
    #allocation6 [shape = 's32[1]{0}', space=sflag, size = 0x4, scoped, tag = 'scoped memory for _lambda_.3']
    %26 = vsyncpa [#allocation4], 0
    %27 = vsyncpa [#allocation6], 0
    // Predicated region
    $region2: #{_lambda_.3} parent=1 // pred_check
      _
    $region3: #{_lambda_.3} parent=1 // pred_check_branch
      %29 = sbr.rel (0) target = $region5
    $region4: #{_lambda_.3} parent=1 // pred_region
      _
    $region5: #{_lambda_.3} parent=1 // pred_fallthru
      _
    // Predicated region
    $region6: #{_lambda_.3} parent=1 // pred_check
      _
    $region7: #{_lambda_.3} parent=1 // pred_check_branch
      %31 = sbr.rel (0) target = $region9
    $region8: #{_lambda_.3} parent=1 // pred_region
      _
    $region9: #{_lambda_.3} parent=1 // pred_fallthru
      _
    // Predicated region
    $region10: #{_lambda_.3} parent=1 // pred_check
      _
    $region11: #{_lambda_.3} parent=1 // pred_check_branch
      %33 = sbr.rel (0) target = $region13
    $region12: #{_lambda_.3} parent=1 // pred_region
      _
    $region13: #{_lambda_.3} parent=1 // pred_fallthru
      _
    // Predicated region
    $region14: #{_lambda_.3} parent=1 // pred_check
      _
    $region15: #{_lambda_.3} parent=1 // pred_check_branch
      %35 = sbr.rel (0) target = $region17
    $region16: #{_lambda_.3} parent=1 // pred_region
      _
    $region17: #{_lambda_.3} parent=1 // pred_fallthru
      _
    // Predicated region
    $region18: #{_lambda_.3} parent=1 // pred_check
      _
    $region19: #{_lambda_.3} parent=1 // pred_check_branch
      %37 = sbr.rel (0) target = $region21
    $region20: #{_lambda_.3} parent=1 // pred_region
      _
    $region21: #{_lambda_.3} parent=1 // pred_fallthru
      _
    // Predicated region
    $region22: #{_lambda_.3} parent=1 // pred_check
      _
    $region23: #{_lambda_.3} parent=1 // pred_check_branch
      %39 = sbr.rel (0) target = $region25
    $region24: #{_lambda_.3} parent=1 // pred_region
      _
    $region25: #{_lambda_.3} parent=1 // pred_fallthru
      _
    // Predicated region
    $region26: #{_lambda_.3} parent=1 // pred_check
      _
    $region27: #{_lambda_.3} parent=1 // pred_check_branch
      %41 = sbr.rel (0) target = $region29
    $region28: #{_lambda_.3} parent=1 // pred_region
      _
    $region29: #{_lambda_.3} parent=1 // pred_fallthru
      _
    // Predicated region
    $region30: #{_lambda_.3} parent=1 // pred_check
      _
    $region31: #{_lambda_.3} parent=1 // pred_check_branch
      %43 = sbr.rel (0) target = $region33
    $region32: #{_lambda_.3} parent=1 // pred_region
      _
    $region33: #{_lambda_.3} parent=1 // pred_fallthru
      _
    // Predicated region
    $region34: #{_lambda_.3} parent=1 // pred_check
      _
    $region35: #{_lambda_.3} parent=1 // pred_check_branch
      %45 = sbr.rel (0) target = $region37
    $region36: #{_lambda_.3} parent=1 // pred_region
      _
    $region37: #{_lambda_.3} parent=1 // pred_fallthru
      _
    // Predicated region
    $region38: #{_lambda_.3} parent=1 // pred_check
      _
    $region39: #{_lambda_.3} parent=1 // pred_check_branch
      %47 = sbr.rel (0) target = $region41
    $region40: #{_lambda_.3} parent=1 // pred_region
      _
    $region41: #{_lambda_.3} parent=1 // pred_fallthru
      _
    // Predicated region
    $region42: #{_lambda_.3} parent=1 // pred_check
      _
    $region43: #{_lambda_.3} parent=1 // pred_check_branch
      %49 = sbr.rel (0) target = $region45
    $region44: #{_lambda_.3} parent=1 // pred_region
      _
    $region45: #{_lambda_.3} parent=1 // pred_fallthru
      _
    // Predicated region
    $region46: #{_lambda_.3} parent=1 // pred_check
      _
    $region47: #{_lambda_.3} parent=1 // pred_check_branch
      %51 = sbr.rel (0) target = $region49
    $region48: #{_lambda_.3} parent=1 // pred_region
      _
    $region49: #{_lambda_.3} parent=1 // pred_fallthru
      _
    // Predicated region
    $region50: #{_lambda_.3} parent=1 // pred_check
      _
    $region51: #{_lambda_.3} parent=1 // pred_check_branch
      %53 = sbr.rel (0) target = $region53
    $region52: #{_lambda_.3} parent=1 // pred_region
      _
    $region53: #{_lambda_.3} parent=1 // pred_fallthru
      _
    %v54 = vld [vmem:[%s0] sm:$0xf]
    %v55 = vld [vmem:[%s1] sm:$0xff]
    %v56 = vld [vmem:[%s1 + $0x8] sm:$0xff]
    %v57 = vld [vmem:[%s1 + $0x10] sm:$0xff]
    %v58 = vld [vmem:[%s1 + $0x18] sm:$0xff]
    %v59 = vld [vmem:[%s2] sm:$0x1]
    %v61 = vlaneseq
    %v62 = vshrl.u32 %v61, 7
    %v63 = vsub.s32 0, %v62
    %v64 = vrot.slane %v59, %v63
    %vm66 = vcmask 261120
    %v68 = vsel %vm66, %v54, 0
    %70 = vmatprep.subr.mxu0 0.0
    %71 = vmatpush1.msra.mxu0 %v55
    %72 = vmatprep.subr.mxu0 0.0
    %73 = vmatpush1.msra.mxu0 %v56
    %74 = vmatprep.subr.mxu0 0.0
    %75 = vmatpush1.msra.mxu0 %v57
    %76 = vmatprep.subr.mxu0 0.0
    %77 = vmatpush1.msra.mxu0 %v58
    %78 = vmatprep.subr.mxu0 0.0
    %79 = vmatpush1.msra.mxu0 0.0
    %80 = vmatprep.subr.mxu0 0.0
    %81 = vmatpush1.msra.mxu0 0.0
    %82 = vmatprep.subr.mxu0 0.0
    %83 = vmatpush1.msra.mxu0 0.0
    %84 = vmatprep.subr.mxu0 0.0
    %85 = vmatpush1.msra.mxu0 0.0
    %86 = vmatprep.subr.mxu0 0.0
    %87 = vmatpush1.msra.mxu0 0.0
    %88 = vmatprep.subr.mxu0 0.0
    %89 = vmatpush1.msra.mxu0 0.0
    %90 = vmatprep.subr.mxu0 0.0
    %91 = vmatpush1.msra.mxu0 0.0
    %92 = vmatprep.subr.mxu0 0.0
    %93 = vmatpush1.msra.mxu0 0.0
    %94 = vmatprep.subr.mxu0 0.0
    %95 = vmatpush1.msra.mxu0 0.0
    %96 = vmatprep.subr.mxu0 0.0
    %97 = vmatpush1.msra.mxu0 0.0
    %98 = vmatprep.subr.mxu0 0.0
    %99 = vmatpush1.msra.mxu0 0.0
    %100 = vmatprep.subr.mxu0 0.0
    %101 = vmatpush1.msra.mxu0 0.0
    %102 = vmatprep.subr.mxu0 0.0
    %103 = vmatpush1.msra.mxu0 0.0
    %104 = vmatprep.subr.mxu0 0.0
    %105 = vmatpush1.msra.mxu0 0.0
    %106 = vmatprep.subr.mxu0 0.0
    %107 = vmatpush1.msra.mxu0 0.0
    %108 = vmatprep.subr.mxu0 0.0
    %109 = vmatpush1.msra.mxu0 0.0
    %110 = vmatprep.subr.mxu0 0.0
    %111 = vmatpush1.msra.mxu0 0.0
    %112 = vmatprep.subr.mxu0 0.0
    %113 = vmatpush1.msra.mxu0 0.0
    %114 = vmatprep.subr.mxu0 0.0
    %115 = vmatpush1.msra.mxu0 0.0
    %116 = vmatprep.subr.mxu0 0.0
    %117 = vmatpush1.msra.mxu0 0.0
    %118 = vmatprep.subr.mxu0 0.0
    %119 = vmatpush1.msra.mxu0 0.0
    %120 = vmatprep.subr.mxu0 0.0
    %121 = vmatpush1.msra.mxu0 0.0
    %122 = vmatprep.subr.mxu0 0.0
    %123 = vmatpush1.msra.mxu0 0.0
    %124 = vmatprep.subr.mxu0 0.0
    %125 = vmatpush1.msra.mxu0 0.0
    %126 = vmatprep.subr.mxu0 0.0
    %127 = vmatpush1.msra.mxu0 0.0
    %128 = vmatprep.subr.mxu0 0.0
    %129 = vmatpush1.msra.mxu0 0.0
    %130 = vmatprep.subr.mxu0 0.0
    %131 = vmatpush1.msra.mxu0 0.0
    %132 = vmatprep.subr.mxu0 0.0
    %133 = vmatpush1.msra.mxu0 0.0
    %134 = vmatprep.mubr.f32.mxu0 0.0
    %135 = vmatmul.mubr.f32.gmra.mrb[0].mxu0 %v68
    %v136 = vpop.f32.mrb[0].mxu0
    %v137 = vadd.f32 %v64, %v136
    %v138 = vpop.f32.mrb[0].mxu0
    %139 = vdwg.mxu0
    %vm140 = vcmp.gt.f32.partialorder %v137, 0.0
    %v141 = vmul.f32 %v137, 0.1
    %v142 = vsel %vm140, %v137, %v141
    %vm143 = vcmask 355328
    %144 = vst.msk [vmem:[%s13] sm:$0xf] %vm143, %v142
    %v145 = vld [vmem:[%s3] sm:$0xff]
    %v146 = vld [vmem:[%s3 + $0x8] sm:$0xff]
    %v147 = vld [vmem:[%s3 + $0x10] sm:$0xff]
    %v148 = vld [vmem:[%s3 + $0x18] sm:$0xff]
    %v149 = vld [vmem:[%s3 + $0x20] sm:$0xff]
    %v150 = vld [vmem:[%s3 + $0x28] sm:$0xf]
    %v151 = vld [vmem:[%s4] sm:$0x1]
    %v153 = vlaneseq
    %v154 = vshrl.u32 %v153, 7
    %v155 = vsub.s32 0, %v154
    %v156 = vrot.slane %v151, %v155
    %vm158 = vcmask 359424
    %v160 = vsel %vm158, %v142, 0
    %vm162 = vcmask 1043456
    %v164 = vsel %vm162, %v150, 0
    %166 = vmatprep.subr.mxu0 0.0
    %167 = vmatpush1.msra.mxu0 %v145
    %168 = vmatprep.subr.mxu0 0.0
    %169 = vmatpush1.msra.mxu0 %v146
    %170 = vmatprep.subr.mxu0 0.0
    %171 = vmatpush1.msra.mxu0 %v147
    %172 = vmatprep.subr.mxu0 0.0
    %173 = vmatpush1.msra.mxu0 %v148
    %174 = vmatprep.subr.mxu0 0.0
    %175 = vmatpush1.msra.mxu0 %v149
    %176 = vmatprep.subr.mxu0 0.0
    %177 = vmatpush1.msra.mxu0 %v164
    %178 = vmatprep.subr.mxu0 0.0
    %179 = vmatpush1.msra.mxu0 0.0
    %180 = vmatprep.subr.mxu0 0.0
    %181 = vmatpush1.msra.mxu0 0.0
    %182 = vmatprep.subr.mxu0 0.0
    %183 = vmatpush1.msra.mxu0 0.0
    %184 = vmatprep.subr.mxu0 0.0
    %185 = vmatpush1.msra.mxu0 0.0
    %186 = vmatprep.subr.mxu0 0.0
    %187 = vmatpush1.msra.mxu0 0.0
    %188 = vmatprep.subr.mxu0 0.0
    %189 = vmatpush1.msra.mxu0 0.0
    %190 = vmatprep.subr.mxu0 0.0
    %191 = vmatpush1.msra.mxu0 0.0
    %192 = vmatprep.subr.mxu0 0.0
    %193 = vmatpush1.msra.mxu0 0.0
    %194 = vmatprep.subr.mxu0 0.0
    %195 = vmatpush1.msra.mxu0 0.0
    %196 = vmatprep.subr.mxu0 0.0
    %197 = vmatpush1.msra.mxu0 0.0
    %198 = vmatprep.subr.mxu0 0.0
    %199 = vmatpush1.msra.mxu0 0.0
    %200 = vmatprep.subr.mxu0 0.0
    %201 = vmatpush1.msra.mxu0 0.0
    %202 = vmatprep.subr.mxu0 0.0
    %203 = vmatpush1.msra.mxu0 0.0
    %204 = vmatprep.subr.mxu0 0.0
    %205 = vmatpush1.msra.mxu0 0.0
    %206 = vmatprep.subr.mxu0 0.0
    %207 = vmatpush1.msra.mxu0 0.0
    %208 = vmatprep.subr.mxu0 0.0
    %209 = vmatpush1.msra.mxu0 0.0
    %210 = vmatprep.subr.mxu0 0.0
    %211 = vmatpush1.msra.mxu0 0.0
    %212 = vmatprep.subr.mxu0 0.0
    %213 = vmatpush1.msra.mxu0 0.0
    %214 = vmatprep.subr.mxu0 0.0
    %215 = vmatpush1.msra.mxu0 0.0
    %216 = vmatprep.subr.mxu0 0.0
    %217 = vmatpush1.msra.mxu0 0.0
    %218 = vmatprep.subr.mxu0 0.0
    %219 = vmatpush1.msra.mxu0 0.0
    %220 = vmatprep.subr.mxu0 0.0
    %221 = vmatpush1.msra.mxu0 0.0
    %222 = vmatprep.subr.mxu0 0.0
    %223 = vmatpush1.msra.mxu0 0.0
    %224 = vmatprep.subr.mxu0 0.0
    %225 = vmatpush1.msra.mxu0 0.0
    %226 = vmatprep.subr.mxu0 0.0
    %227 = vmatpush1.msra.mxu0 0.0
    %228 = vmatprep.subr.mxu0 0.0
    %229 = vmatpush1.msra.mxu0 0.0
    %230 = vmatprep.mubr.f32.mxu0 0.0
    %231 = vmatmul.mubr.f32.gmra.mrb[0].mxu0 %v160
    %v232 = vpop.f32.mrb[0].mxu0
    %v233 = vadd.f32 %v156, %v232
    %v234 = vpop.f32.mrb[0].mxu0
    %235 = vdwg.mxu0
    %vm236 = vcmp.gt.f32.partialorder %v233, 0.0
    %v237 = vmul.f32 %v233, 0.1
    %v238 = vsel %vm236, %v233, %v237
    %vm239 = vcmask 257024
    %240 = vst.msk [vmem:[%s14] sm:$0xf] %vm239, %v238
    %v241 = vld [vmem:[%s5] sm:$0xff]
    %v242 = vld [vmem:[%s5 + $0x8] sm:$0xff]
    %v243 = vld [vmem:[%s5 + $0x10] sm:$0xff]
    %v244 = vld [vmem:[%s5 + $0x18] sm:$0xff]
    %v245 = vld [vmem:[%s6] sm:$0x1]
    %v247 = vlaneseq
    %v248 = vshrl.u32 %v247, 7
    %v249 = vsub.s32 0, %v248
    %v250 = vrot.slane %v245, %v249
    %v253 = vsel %vm66, %v238, 0
    %255 = vmatprep.subr.mxu0 0.0
    %256 = vmatpush1.msra.mxu0 %v241
    %257 = vmatprep.subr.mxu0 0.0
    %258 = vmatpush1.msra.mxu0 %v242
    %259 = vmatprep.subr.mxu0 0.0
    %260 = vmatpush1.msra.mxu0 %v243
    %261 = vmatprep.subr.mxu0 0.0
    %262 = vmatpush1.msra.mxu0 %v244
    %263 = vmatprep.subr.mxu0 0.0
    %264 = vmatpush1.msra.mxu0 0.0
    %265 = vmatprep.subr.mxu0 0.0
    %266 = vmatpush1.msra.mxu0 0.0
    %267 = vmatprep.subr.mxu0 0.0
    %268 = vmatpush1.msra.mxu0 0.0
    %269 = vmatprep.subr.mxu0 0.0
    %270 = vmatpush1.msra.mxu0 0.0
    %271 = vmatprep.subr.mxu0 0.0
    %272 = vmatpush1.msra.mxu0 0.0
    %273 = vmatprep.subr.mxu0 0.0
    %274 = vmatpush1.msra.mxu0 0.0
    %275 = vmatprep.subr.mxu0 0.0
    %276 = vmatpush1.msra.mxu0 0.0
    %277 = vmatprep.subr.mxu0 0.0
    %278 = vmatpush1.msra.mxu0 0.0
    %279 = vmatprep.subr.mxu0 0.0
    %280 = vmatpush1.msra.mxu0 0.0
    %281 = vmatprep.subr.mxu0 0.0
    %282 = vmatpush1.msra.mxu0 0.0
    %283 = vmatprep.subr.mxu0 0.0
    %284 = vmatpush1.msra.mxu0 0.0
    %285 = vmatprep.subr.mxu0 0.0
    %286 = vmatpush1.msra.mxu0 0.0
    %287 = vmatprep.subr.mxu0 0.0
    %288 = vmatpush1.msra.mxu0 0.0
    %289 = vmatprep.subr.mxu0 0.0
    %290 = vmatpush1.msra.mxu0 0.0
    %291 = vmatprep.subr.mxu0 0.0
    %292 = vmatpush1.msra.mxu0 0.0
    %293 = vmatprep.subr.mxu0 0.0
    %294 = vmatpush1.msra.mxu0 0.0
    %295 = vmatprep.subr.mxu0 0.0
    %296 = vmatpush1.msra.mxu0 0.0
    %297 = vmatprep.subr.mxu0 0.0
    %298 = vmatpush1.msra.mxu0 0.0
    %299 = vmatprep.subr.mxu0 0.0
    %300 = vmatpush1.msra.mxu0 0.0
    %301 = vmatprep.subr.mxu0 0.0
    %302 = vmatpush1.msra.mxu0 0.0
    %303 = vmatprep.subr.mxu0 0.0
    %304 = vmatpush1.msra.mxu0 0.0
    %305 = vmatprep.subr.mxu0 0.0
    %306 = vmatpush1.msra.mxu0 0.0
    %307 = vmatprep.subr.mxu0 0.0
    %308 = vmatpush1.msra.mxu0 0.0
    %309 = vmatprep.subr.mxu0 0.0
    %310 = vmatpush1.msra.mxu0 0.0
    %311 = vmatprep.subr.mxu0 0.0
    %312 = vmatpush1.msra.mxu0 0.0
    %313 = vmatprep.subr.mxu0 0.0
    %314 = vmatpush1.msra.mxu0 0.0
    %315 = vmatprep.subr.mxu0 0.0
    %316 = vmatpush1.msra.mxu0 0.0
    %317 = vmatprep.subr.mxu0 0.0
    %318 = vmatpush1.msra.mxu0 0.0
    %319 = vmatprep.mubr.f32.mxu0 0.0
    %320 = vmatmul.mubr.f32.gmra.mrb[0].mxu0 %v253
    %v321 = vpop.f32.mrb[0].mxu0
    %v322 = vadd.f32 %v250, %v321
    %v323 = vpop.f32.mrb[0].mxu0
    %324 = vdwg.mxu0
    %vm325 = vcmp.gt.f32.partialorder %v322, 0.0
    %v326 = vmul.f32 %v322, 0.1
    %v327 = vsel %vm325, %v322, %v326
    %328 = vst.msk [vmem:[%s15] sm:$0xf] %vm239, %v327
    %v329 = vld [vmem:[%s7] sm:$0xff]
    %v330 = vld [vmem:[%s7 + $0x8] sm:$0xff]
    %v331 = vld [vmem:[%s7 + $0x10] sm:$0xff]
    %v332 = vld [vmem:[%s7 + $0x18] sm:$0xff]
    %v333 = vld [vmem:[%s8] sm:$0x1]
    %v335 = vlaneseq
    %v336 = vshrl.u32 %v335, 7
    %v337 = vsub.s32 0, %v336
    %v338 = vrot.slane %v333, %v337
    %v341 = vsel %vm66, %v327, 0
    %343 = vmatprep.subr.mxu0 0.0
    %344 = vmatpush1.msra.mxu0 %v329
    %345 = vmatprep.subr.mxu0 0.0
    %346 = vmatpush1.msra.mxu0 %v330
    %347 = vmatprep.subr.mxu0 0.0
    %348 = vmatpush1.msra.mxu0 %v331
    %349 = vmatprep.subr.mxu0 0.0
    %350 = vmatpush1.msra.mxu0 %v332
    %351 = vmatprep.subr.mxu0 0.0
    %352 = vmatpush1.msra.mxu0 0.0
    %353 = vmatprep.subr.mxu0 0.0
    %354 = vmatpush1.msra.mxu0 0.0
    %355 = vmatprep.subr.mxu0 0.0
    %356 = vmatpush1.msra.mxu0 0.0
    %357 = vmatprep.subr.mxu0 0.0
    %358 = vmatpush1.msra.mxu0 0.0
    %359 = vmatprep.subr.mxu0 0.0
    %360 = vmatpush1.msra.mxu0 0.0
    %361 = vmatprep.subr.mxu0 0.0
    %362 = vmatpush1.msra.mxu0 0.0
    %363 = vmatprep.subr.mxu0 0.0
    %364 = vmatpush1.msra.mxu0 0.0
    %365 = vmatprep.subr.mxu0 0.0
    %366 = vmatpush1.msra.mxu0 0.0
    %367 = vmatprep.subr.mxu0 0.0
    %368 = vmatpush1.msra.mxu0 0.0
    %369 = vmatprep.subr.mxu0 0.0
    %370 = vmatpush1.msra.mxu0 0.0
    %371 = vmatprep.subr.mxu0 0.0
    %372 = vmatpush1.msra.mxu0 0.0
    %373 = vmatprep.subr.mxu0 0.0
    %374 = vmatpush1.msra.mxu0 0.0
    %375 = vmatprep.subr.mxu0 0.0
    %376 = vmatpush1.msra.mxu0 0.0
    %377 = vmatprep.subr.mxu0 0.0
    %378 = vmatpush1.msra.mxu0 0.0
    %379 = vmatprep.subr.mxu0 0.0
    %380 = vmatpush1.msra.mxu0 0.0
    %381 = vmatprep.subr.mxu0 0.0
    %382 = vmatpush1.msra.mxu0 0.0
    %383 = vmatprep.subr.mxu0 0.0
    %384 = vmatpush1.msra.mxu0 0.0
    %385 = vmatprep.subr.mxu0 0.0
    %386 = vmatpush1.msra.mxu0 0.0
    %387 = vmatprep.subr.mxu0 0.0
    %388 = vmatpush1.msra.mxu0 0.0
    %389 = vmatprep.subr.mxu0 0.0
    %390 = vmatpush1.msra.mxu0 0.0
    %391 = vmatprep.subr.mxu0 0.0
    %392 = vmatpush1.msra.mxu0 0.0
    %393 = vmatprep.subr.mxu0 0.0
    %394 = vmatpush1.msra.mxu0 0.0
    %395 = vmatprep.subr.mxu0 0.0
    %396 = vmatpush1.msra.mxu0 0.0
    %397 = vmatprep.subr.mxu0 0.0
    %398 = vmatpush1.msra.mxu0 0.0
    %399 = vmatprep.subr.mxu0 0.0
    %400 = vmatpush1.msra.mxu0 0.0
    %401 = vmatprep.subr.mxu0 0.0
    %402 = vmatpush1.msra.mxu0 0.0
    %403 = vmatprep.subr.mxu0 0.0
    %404 = vmatpush1.msra.mxu0 0.0
    %405 = vmatprep.subr.mxu0 0.0
    %406 = vmatpush1.msra.mxu0 0.0
    %407 = vmatprep.mubr.f32.mxu0 0.0
    %408 = vmatmul.mubr.f32.gmra.mrb[0].mxu0 %v341
    %v409 = vpop.f32.mrb[0].mxu0
    %v410 = vadd.f32 %v338, %v409
    %v411 = vpop.f32.mrb[0].mxu0
    %412 = vdwg.mxu0
    %vm413 = vcmp.gt.f32.partialorder %v410, 0.0
    %v414 = vmul.f32 %v410, 0.1
    %v415 = vsel %vm413, %v410, %v414
    %416 = vst.msk [vmem:[#allocation3] sm:$0xf] %vm239, %v415
    %v417 = vld [vmem:[%s9] sm:$0xff]
    %v418 = vld [vmem:[%s9 + $0x8] sm:$0xff]
    %v419 = vld [vmem:[%s9 + $0x10] sm:$0xff]
    %v420 = vld [vmem:[%s9 + $0x18] sm:$0xff]
    %v421 = vld [vmem:[%s10] sm:$0x1]
    %v423 = vlaneseq
    %v424 = vshrl.u32 %v423, 7
    %v425 = vsub.s32 0, %v424
    %v426 = vrot.slane %v421, %v425
    %v429 = vsel %vm66, %v415, 0
    %431 = vmatprep.subr.mxu0 0.0
    %432 = vmatpush1.msra.mxu0 %v417
    %433 = vmatprep.subr.mxu0 0.0
    %434 = vmatpush1.msra.mxu0 %v418
    %435 = vmatprep.subr.mxu0 0.0
    %436 = vmatpush1.msra.mxu0 %v419
    %437 = vmatprep.subr.mxu0 0.0
    %438 = vmatpush1.msra.mxu0 %v420
    %439 = vmatprep.subr.mxu0 0.0
    %440 = vmatpush1.msra.mxu0 0.0
    %441 = vmatprep.subr.mxu0 0.0
    %442 = vmatpush1.msra.mxu0 0.0
    %443 = vmatprep.subr.mxu0 0.0
    %444 = vmatpush1.msra.mxu0 0.0
    %445 = vmatprep.subr.mxu0 0.0
    %446 = vmatpush1.msra.mxu0 0.0
    %447 = vmatprep.subr.mxu0 0.0
    %448 = vmatpush1.msra.mxu0 0.0
    %449 = vmatprep.subr.mxu0 0.0
    %450 = vmatpush1.msra.mxu0 0.0
    %451 = vmatprep.subr.mxu0 0.0
    %452 = vmatpush1.msra.mxu0 0.0
    %453 = vmatprep.subr.mxu0 0.0
    %454 = vmatpush1.msra.mxu0 0.0
    %455 = vmatprep.subr.mxu0 0.0
    %456 = vmatpush1.msra.mxu0 0.0
    %457 = vmatprep.subr.mxu0 0.0
    %458 = vmatpush1.msra.mxu0 0.0
    %459 = vmatprep.subr.mxu0 0.0
    %460 = vmatpush1.msra.mxu0 0.0
    %461 = vmatprep.subr.mxu0 0.0
    %462 = vmatpush1.msra.mxu0 0.0
    %463 = vmatprep.subr.mxu0 0.0
    %464 = vmatpush1.msra.mxu0 0.0
    %465 = vmatprep.subr.mxu0 0.0
    %466 = vmatpush1.msra.mxu0 0.0
    %467 = vmatprep.subr.mxu0 0.0
    %468 = vmatpush1.msra.mxu0 0.0
    %469 = vmatprep.subr.mxu0 0.0
    %470 = vmatpush1.msra.mxu0 0.0
    %471 = vmatprep.subr.mxu0 0.0
    %472 = vmatpush1.msra.mxu0 0.0
    %473 = vmatprep.subr.mxu0 0.0
    %474 = vmatpush1.msra.mxu0 0.0
    %475 = vmatprep.subr.mxu0 0.0
    %476 = vmatpush1.msra.mxu0 0.0
    %477 = vmatprep.subr.mxu0 0.0
    %478 = vmatpush1.msra.mxu0 0.0
    %479 = vmatprep.subr.mxu0 0.0
    %480 = vmatpush1.msra.mxu0 0.0
    %481 = vmatprep.subr.mxu0 0.0
    %482 = vmatpush1.msra.mxu0 0.0
    %483 = vmatprep.subr.mxu0 0.0
    %484 = vmatpush1.msra.mxu0 0.0
    %485 = vmatprep.subr.mxu0 0.0
    %486 = vmatpush1.msra.mxu0 0.0
    %487 = vmatprep.subr.mxu0 0.0
    %488 = vmatpush1.msra.mxu0 0.0
    %489 = vmatprep.subr.mxu0 0.0
    %490 = vmatpush1.msra.mxu0 0.0
    %491 = vmatprep.subr.mxu0 0.0
    %492 = vmatpush1.msra.mxu0 0.0
    %493 = vmatprep.subr.mxu0 0.0
    %494 = vmatpush1.msra.mxu0 0.0
    %495 = vmatprep.mubr.f32.mxu0 0.0
    %496 = vmatmul.mubr.f32.gmra.mrb[0].mxu0 %v429
    %v497 = vpop.f32.mrb[0].mxu0
    %v498 = vadd.f32 %v426, %v497
    %v499 = vpop.f32.mrb[0].mxu0
    %500 = vdwg.mxu0
    %vm501 = vcmp.gt.f32.partialorder %v498, 0.0
    %v502 = vmul.f32 %v498, 0.1
    %v503 = vsel %vm501, %v498, %v502
    %504 = vst.msk [vmem:[#allocation5] sm:$0xf] %vm239, %v503
    %v505 = vld [vmem:[%s11] sm:$0xff]
    %v506 = vld [vmem:[%s11 + $0x8] sm:$0xff]
    %v507 = vld [vmem:[%s11 + $0x10] sm:$0xff]
    %v508 = vld [vmem:[%s11 + $0x18] sm:$0xff]
    %v509 = vld [vmem:[#allocation2] sm:$0x1]
    %v511 = vlaneseq
    %v512 = vshrl.u32 %v511, 7
    %v513 = vsub.s32 0, %v512
    %v514 = vrot.slane %v509, %v513
    %v517 = vsel %vm66, %v503, 0
    %519 = vmatprep.subr.mxu0 0.0
    %520 = vmatpush1.msra.mxu0 %v505
    %521 = vmatprep.subr.mxu0 0.0
    %522 = vmatpush1.msra.mxu0 %v506
    %523 = vmatprep.subr.mxu0 0.0
    %524 = vmatpush1.msra.mxu0 %v507
    %525 = vmatprep.subr.mxu0 0.0
    %526 = vmatpush1.msra.mxu0 %v508
    %527 = vmatprep.subr.mxu0 0.0
    %528 = vmatpush1.msra.mxu0 0.0
    %529 = vmatprep.subr.mxu0 0.0
    %530 = vmatpush1.msra.mxu0 0.0
    %531 = vmatprep.subr.mxu0 0.0
    %532 = vmatpush1.msra.mxu0 0.0
    %533 = vmatprep.subr.mxu0 0.0
    %534 = vmatpush1.msra.mxu0 0.0
    %535 = vmatprep.subr.mxu0 0.0
    %536 = vmatpush1.msra.mxu0 0.0
    %537 = vmatprep.subr.mxu0 0.0
    %538 = vmatpush1.msra.mxu0 0.0
    %539 = vmatprep.subr.mxu0 0.0
    %540 = vmatpush1.msra.mxu0 0.0
    %541 = vmatprep.subr.mxu0 0.0
    %542 = vmatpush1.msra.mxu0 0.0
    %543 = vmatprep.subr.mxu0 0.0
    %544 = vmatpush1.msra.mxu0 0.0
    %545 = vmatprep.subr.mxu0 0.0
    %546 = vmatpush1.msra.mxu0 0.0
    %547 = vmatprep.subr.mxu0 0.0
    %548 = vmatpush1.msra.mxu0 0.0
    %549 = vmatprep.subr.mxu0 0.0
    %550 = vmatpush1.msra.mxu0 0.0
    %551 = vmatprep.subr.mxu0 0.0
    %552 = vmatpush1.msra.mxu0 0.0
    %553 = vmatprep.subr.mxu0 0.0
    %554 = vmatpush1.msra.mxu0 0.0
    %555 = vmatprep.subr.mxu0 0.0
    %556 = vmatpush1.msra.mxu0 0.0
    %557 = vmatprep.subr.mxu0 0.0
    %558 = vmatpush1.msra.mxu0 0.0
    %559 = vmatprep.subr.mxu0 0.0
    %560 = vmatpush1.msra.mxu0 0.0
    %561 = vmatprep.subr.mxu0 0.0
    %562 = vmatpush1.msra.mxu0 0.0
    %563 = vmatprep.subr.mxu0 0.0
    %564 = vmatpush1.msra.mxu0 0.0
    %565 = vmatprep.subr.mxu0 0.0
    %566 = vmatpush1.msra.mxu0 0.0
    %567 = vmatprep.subr.mxu0 0.0
    %568 = vmatpush1.msra.mxu0 0.0
    %569 = vmatprep.subr.mxu0 0.0
    %570 = vmatpush1.msra.mxu0 0.0
    %571 = vmatprep.subr.mxu0 0.0
    %572 = vmatpush1.msra.mxu0 0.0
    %573 = vmatprep.subr.mxu0 0.0
    %574 = vmatpush1.msra.mxu0 0.0
    %575 = vmatprep.subr.mxu0 0.0
    %576 = vmatpush1.msra.mxu0 0.0
    %577 = vmatprep.subr.mxu0 0.0
    %578 = vmatpush1.msra.mxu0 0.0
    %579 = vmatprep.subr.mxu0 0.0
    %580 = vmatpush1.msra.mxu0 0.0
    %581 = vmatprep.subr.mxu0 0.0
    %582 = vmatpush1.msra.mxu0 0.0
    %583 = vmatprep.mubr.f32.mxu0 0.0
    %584 = vmatmul.mubr.f32.gmra.mrb[0].mxu0 %v517
    %v585 = vpop.f32.mrb[0].mxu0
    %v586 = vadd.f32 %v514, %v585
    %v587 = vpop.f32.mrb[0].mxu0
    %588 = vdwg.mxu0
    %vm589 = vcmask 3072
    %590 = vst.msk [vmem:[%s18] sm:$0xf] %vm589, %v586
    // Predicated region
    $region54: #{_lambda_.3} parent=1 // pred_check
      _
    $region55: #{_lambda_.3} parent=1 // pred_check_branch
      %592 = sbr.rel (0) target = $region57
    $region56: #{_lambda_.3} parent=1 // pred_region
      _
    $region57: #{_lambda_.3} parent=1 // pred_fallthru
      _
    // Predicated region
    $region58: #{_lambda_.3} parent=1 // pred_check
      _
    $region59: #{_lambda_.3} parent=1 // pred_check_branch
      %594 = sbr.rel (0) target = $region61
    $region60: #{_lambda_.3} parent=1 // pred_region
      _
    $region61: #{_lambda_.3} parent=1 // pred_fallthru
      _
    // Predicated region
    $region62: #{_lambda_.3} parent=1 // pred_check
      _
    $region63: #{_lambda_.3} parent=1 // pred_check_branch
      %596 = sbr.rel (0) target = $region65
    $region64: #{_lambda_.3} parent=1 // pred_region
      _
    $region65: #{_lambda_.3} parent=1 // pred_fallthru
      _
    // Predicated region
    $region66: #{_lambda_.3} parent=1 // pred_check
      _
    $region67: #{_lambda_.3} parent=1 // pred_check_branch
      %598 = sbr.rel (0) target = $region69
    $region68: #{_lambda_.3} parent=1 // pred_region
      %s600 = ssub.s32 64, 64
      %601 = vsyncadd [#allocation4], %s600
      %s603 = sshll.u32 [#allocation3], 4
      %s604 = int_to_ptr.vmem [resolvable:$true] %s603
      %606 = dma.vmem_to_hbm [thread:$0]  %s604, 64, %s16, [#allocation4]
    $region69: #{_lambda_.3} parent=1 // pred_fallthru
      _
    // Predicated region
    $region70: #{_lambda_.3} parent=1 // pred_check
      _
    $region71: #{_lambda_.3} parent=1 // pred_check_branch
      %608 = sbr.rel (0) target = $region73
    $region72: #{_lambda_.3} parent=1 // pred_region
      %s610 = ssub.s32 64, 64
      %611 = vsyncadd [#allocation6], %s610
      %s613 = sshll.u32 [#allocation5], 4
      %s614 = int_to_ptr.vmem [resolvable:$true] %s613
      %616 = dma.vmem_to_hbm [thread:$0]  %s614, 64, %s17, [#allocation6]
    $region73: #{_lambda_.3} parent=1 // pred_fallthru
      _
    // Predicated region
    $region74: #{_lambda_.3} parent=1 // pred_check
      _
    $region75: #{_lambda_.3} parent=1 // pred_check_branch
      %618 = sbr.rel (0) target = $region77
    $region76: #{_lambda_.3} parent=1 // pred_region
      _
    $region77: #{_lambda_.3} parent=1 // pred_fallthru
      _
    // Predicated region
    $region78: #{_lambda_.3} parent=1 // pred_check
      _
    $region79: #{_lambda_.3} parent=1 // pred_check_branch
      %620 = sbr.rel (0) target = $region81
    $region80: #{_lambda_.3} parent=1 // pred_region
      _
    $region81: #{_lambda_.3} parent=1 // pred_fallthru
      _
    // Predicated region
    $region82: #{_lambda_.3} parent=1 // pred_check
      _
    $region83: #{_lambda_.3} parent=1 // pred_check_branch
      %622 = sbr.rel (0) target = $region85
    $region84: #{_lambda_.3} parent=1 // pred_region
      _
    $region85: #{_lambda_.3} parent=1 // pred_fallthru
      _
    // Predicated region
    $region86: #{_lambda_.3} parent=1 // pred_check
      _
    $region87: #{_lambda_.3} parent=1 // pred_check_branch
      %624 = sbr.rel (0) target = $region89
    $region88: #{_lambda_.3} parent=1 // pred_region
      _
    $region89: #{_lambda_.3} parent=1 // pred_fallthru
      _
    // Predicated region
    $region90: #{_lambda_.3} parent=1 // pred_check
      _
    $region91: #{_lambda_.3} parent=1 // pred_check_branch
      %626 = sbr.rel (0) target = $region93
    $region92: #{_lambda_.3} parent=1 // pred_region
      %627 = dma.done [#allocation4], 64
    $region93: #{_lambda_.3} parent=1 // pred_fallthru
      _
    // Predicated region
    $region94: #{_lambda_.3} parent=1 // pred_check
      _
    $region95: #{_lambda_.3} parent=1 // pred_check_branch
      %629 = sbr.rel (0) target = $region97
    $region96: #{_lambda_.3} parent=1 // pred_region
      %630 = dma.done [#allocation6], 64
    $region97: #{_lambda_.3} parent=1 // pred_fallthru
      _
    // Predicated region
    $region98: #{_lambda_.3} parent=1 // pred_check
      _
    $region99: #{_lambda_.3} parent=1 // pred_check_branch
      %632 = sbr.rel (0) target = $region101
    $region100: #{_lambda_.3} parent=1 // pred_region
      _
    $region101: #{_lambda_.3} parent=1 // pred_fallthru
      _
    %633 = vsyncpa [#allocation4], 1
    %634 = vsyncpa [#allocation6], 1

// kernel: _lambda_.4
$region0: #{_lambda_.4}
  #allocation0 [shape = 'u32[]', space=smem, size = 0x4, offset = 0x4, fixed_abs, tag = 'smem constant byte address 0x4 - core index']
  #allocation1 [shape = 'u32[144,128]{1,0:T(1,128)}', space=vmem, size = 0x12000, scoped, tag = 'internal scratch']
  #allocation2 [shape = 'f32[1,1]{1,0:T(1,128)S(1)}', space=vmem, size = 0x200, scoped, tag = 'scoped memory for _lambda_.4']
  %s0 = inlined_call_operand.vmem [shape: f32[6,22], index: 0, kind: input, shape index: {}]
  %s1 = inlined_call_operand.vmem [shape: f32[22,32], index: 1, kind: input, shape index: {}]
  %s2 = inlined_call_operand.vmem [shape: f32[1,32], index: 2, kind: input, shape index: {}]
  %s3 = inlined_call_operand.vmem [shape: f32[32,24], index: 3, kind: input, shape index: {}]
  %s4 = inlined_call_operand.vmem [shape: f32[1,24], index: 4, kind: input, shape index: {}]
  %s5 = inlined_call_operand.vmem [shape: f32[24,16], index: 5, kind: input, shape index: {}]
  %s6 = inlined_call_operand.vmem [shape: f32[1,16], index: 6, kind: input, shape index: {}]
  %s7 = inlined_call_operand.vmem [shape: f32[16,32], index: 7, kind: input, shape index: {}]
  %s8 = inlined_call_operand.vmem [shape: f32[1,32], index: 8, kind: input, shape index: {}]
  %s9 = inlined_call_operand.vmem [shape: f32[32,32], index: 9, kind: input, shape index: {}]
  %s10 = inlined_call_operand.vmem [shape: f32[1,32], index: 10, kind: input, shape index: {}]
  %s11 = inlined_call_operand.vmem [shape: f32[32,1], index: 11, kind: input, shape index: {}]
  %s12 = inlined_call_operand.<no memory space> [shape: f32[1,1], index: 12, kind: input, shape index: {}]
  %s13 = inlined_call_operand.vmem [shape: f32[6,32], index: 13, kind: output, shape index: {0}]
  %s14 = inlined_call_operand.vmem [shape: f32[6,24], index: 14, kind: output, shape index: {1}]
  %s15 = inlined_call_operand.vmem [shape: f32[6,16], index: 15, kind: output, shape index: {2}]
  %s16 = inlined_call_operand.vmem [shape: f32[6,32], index: 16, kind: output, shape index: {3}]
  %s17 = inlined_call_operand.vmem [shape: f32[6,32], index: 17, kind: output, shape index: {4}]
  %s18 = inlined_call_operand.vmem [shape: f32[6,1], index: 18, kind: output, shape index: {5}]
  %19 = xla_tuple %s13, %s14, %s15, %s16, %s17, %s18
  %s20 = sld [smem:[#allocation0]]
  $region102: #{_lambda_.4} parent=0
    _
  %s22 = ssub.s32 1, %s20
  %s23 = scalar_select 0, %s22, %s20
  %v24 = vstv %s12
  %25 = vst [vmem:[#allocation2] sm:$0x1] %v24
  // Predicated region
  $region2: #{_lambda_.4} parent=0 // pred_check
    _
  $region3: #{_lambda_.4} parent=0 // pred_check_branch
    %27 = sbr.rel (0) target = $region5
  $region4: #{_lambda_.4} parent=0 // pred_region
    _
  $region5: #{_lambda_.4} parent=0 // pred_fallthru
    _
  // Predicated region
  $region6: #{_lambda_.4} parent=0 // pred_check
    _
  $region7: #{_lambda_.4} parent=0 // pred_check_branch
    %29 = sbr.rel (0) target = $region9
  $region8: #{_lambda_.4} parent=0 // pred_region
    _
  $region9: #{_lambda_.4} parent=0 // pred_fallthru
    _
  // Predicated region
  $region10: #{_lambda_.4} parent=0 // pred_check
    _
  $region11: #{_lambda_.4} parent=0 // pred_check_branch
    %31 = sbr.rel (0) target = $region13
  $region12: #{_lambda_.4} parent=0 // pred_region
    _
  $region13: #{_lambda_.4} parent=0 // pred_fallthru
    _
  // Predicated region
  $region14: #{_lambda_.4} parent=0 // pred_check
    _
  $region15: #{_lambda_.4} parent=0 // pred_check_branch
    %33 = sbr.rel (0) target = $region17
  $region16: #{_lambda_.4} parent=0 // pred_region
    _
  $region17: #{_lambda_.4} parent=0 // pred_fallthru
    _
  // Predicated region
  $region18: #{_lambda_.4} parent=0 // pred_check
    _
  $region19: #{_lambda_.4} parent=0 // pred_check_branch
    %35 = sbr.rel (0) target = $region21
  $region20: #{_lambda_.4} parent=0 // pred_region
    _
  $region21: #{_lambda_.4} parent=0 // pred_fallthru
    _
  // Predicated region
  $region22: #{_lambda_.4} parent=0 // pred_check
    _
  $region23: #{_lambda_.4} parent=0 // pred_check_branch
    %37 = sbr.rel (0) target = $region25
  $region24: #{_lambda_.4} parent=0 // pred_region
    _
  $region25: #{_lambda_.4} parent=0 // pred_fallthru
    _
  // Predicated region
  $region26: #{_lambda_.4} parent=0 // pred_check
    _
  $region27: #{_lambda_.4} parent=0 // pred_check_branch
    %39 = sbr.rel (0) target = $region29
  $region28: #{_lambda_.4} parent=0 // pred_region
    _
  $region29: #{_lambda_.4} parent=0 // pred_fallthru
    _
  // Predicated region
  $region30: #{_lambda_.4} parent=0 // pred_check
    _
  $region31: #{_lambda_.4} parent=0 // pred_check_branch
    %41 = sbr.rel (0) target = $region33
  $region32: #{_lambda_.4} parent=0 // pred_region
    _
  $region33: #{_lambda_.4} parent=0 // pred_fallthru
    _
  // Predicated region
  $region34: #{_lambda_.4} parent=0 // pred_check
    _
  $region35: #{_lambda_.4} parent=0 // pred_check_branch
    %43 = sbr.rel (0) target = $region37
  $region36: #{_lambda_.4} parent=0 // pred_region
    _
  $region37: #{_lambda_.4} parent=0 // pred_fallthru
    _
  // Predicated region
  $region38: #{_lambda_.4} parent=0 // pred_check
    _
  $region39: #{_lambda_.4} parent=0 // pred_check_branch
    %45 = sbr.rel (0) target = $region41
  $region40: #{_lambda_.4} parent=0 // pred_region
    _
  $region41: #{_lambda_.4} parent=0 // pred_fallthru
    _
  // Predicated region
  $region42: #{_lambda_.4} parent=0 // pred_check
    _
  $region43: #{_lambda_.4} parent=0 // pred_check_branch
    %47 = sbr.rel (0) target = $region45
  $region44: #{_lambda_.4} parent=0 // pred_region
    _
  $region45: #{_lambda_.4} parent=0 // pred_fallthru
    _
  // Predicated region
  $region46: #{_lambda_.4} parent=0 // pred_check
    _
  $region47: #{_lambda_.4} parent=0 // pred_check_branch
    %49 = sbr.rel (0) target = $region49
  $region48: #{_lambda_.4} parent=0 // pred_region
    _
  $region49: #{_lambda_.4} parent=0 // pred_fallthru
    _
  // Predicated region
  $region50: #{_lambda_.4} parent=0 // pred_check
    _
  $region51: #{_lambda_.4} parent=0 // pred_check_branch
    %51 = sbr.rel (0) target = $region53
  $region52: #{_lambda_.4} parent=0 // pred_region
    _
  $region53: #{_lambda_.4} parent=0 // pred_fallthru
    _
  %v52 = vld [vmem:[%s0] sm:$0x3f]
  %v53 = vld [vmem:[%s1] sm:$0xff]
  %v54 = vld [vmem:[%s1 + $0x8] sm:$0xff]
  %v55 = vld [vmem:[%s1 + $0x10] sm:$0x3f]
  %v56 = vld [vmem:[%s2] sm:$0x1]
  %v58 = vlaneseq
  %v59 = vshrl.u32 %v58, 7
  %v60 = vsub.s32 0, %v59
  %v61 = vrot.slane %v56, %v60
  %vm63 = vcmask 179200
  %v65 = vsel %vm63, %v52, 0
  %vm67 = vcmask 1045504
  %v69 = vsel %vm67, %v55, 0
  %71 = vmatprep.subr.mxu0 0.0
  %72 = vmatpush1.msra.mxu0 %v53
  %73 = vmatprep.subr.mxu0 0.0
  %74 = vmatpush1.msra.mxu0 %v54
  %75 = vmatprep.subr.mxu0 0.0
  %76 = vmatpush1.msra.mxu0 %v69
  %77 = vmatprep.subr.mxu0 0.0
  %78 = vmatpush1.msra.mxu0 0.0
  %79 = vmatprep.subr.mxu0 0.0
  %80 = vmatpush1.msra.mxu0 0.0
  %81 = vmatprep.subr.mxu0 0.0
  %82 = vmatpush1.msra.mxu0 0.0
  %83 = vmatprep.subr.mxu0 0.0
  %84 = vmatpush1.msra.mxu0 0.0
  %85 = vmatprep.subr.mxu0 0.0
  %86 = vmatpush1.msra.mxu0 0.0
  %87 = vmatprep.subr.mxu0 0.0
  %88 = vmatpush1.msra.mxu0 0.0
  %89 = vmatprep.subr.mxu0 0.0
  %90 = vmatpush1.msra.mxu0 0.0
  %91 = vmatprep.subr.mxu0 0.0
  %92 = vmatpush1.msra.mxu0 0.0
  %93 = vmatprep.subr.mxu0 0.0
  %94 = vmatpush1.msra.mxu0 0.0
  %95 = vmatprep.subr.mxu0 0.0
  %96 = vmatpush1.msra.mxu0 0.0
  %97 = vmatprep.subr.mxu0 0.0
  %98 = vmatpush1.msra.mxu0 0.0
  %99 = vmatprep.subr.mxu0 0.0
  %100 = vmatpush1.msra.mxu0 0.0
  %101 = vmatprep.subr.mxu0 0.0
  %102 = vmatpush1.msra.mxu0 0.0
  %103 = vmatprep.subr.mxu0 0.0
  %104 = vmatpush1.msra.mxu0 0.0
  %105 = vmatprep.subr.mxu0 0.0
  %106 = vmatpush1.msra.mxu0 0.0
  %107 = vmatprep.subr.mxu0 0.0
  %108 = vmatpush1.msra.mxu0 0.0
  %109 = vmatprep.subr.mxu0 0.0
  %110 = vmatpush1.msra.mxu0 0.0
  %111 = vmatprep.subr.mxu0 0.0
  %112 = vmatpush1.msra.mxu0 0.0
  %113 = vmatprep.subr.mxu0 0.0
  %114 = vmatpush1.msra.mxu0 0.0
  %115 = vmatprep.subr.mxu0 0.0
  %116 = vmatpush1.msra.mxu0 0.0
  %117 = vmatprep.subr.mxu0 0.0
  %118 = vmatpush1.msra.mxu0 0.0
  %119 = vmatprep.subr.mxu0 0.0
  %120 = vmatpush1.msra.mxu0 0.0
  %121 = vmatprep.subr.mxu0 0.0
  %122 = vmatpush1.msra.mxu0 0.0
  %123 = vmatprep.subr.mxu0 0.0
  %124 = vmatpush1.msra.mxu0 0.0
  %125 = vmatprep.subr.mxu0 0.0
  %126 = vmatpush1.msra.mxu0 0.0
  %127 = vmatprep.subr.mxu0 0.0
  %128 = vmatpush1.msra.mxu0 0.0
  %129 = vmatprep.subr.mxu0 0.0
  %130 = vmatpush1.msra.mxu0 0.0
  %131 = vmatprep.subr.mxu0 0.0
  %132 = vmatpush1.msra.mxu0 0.0
  %133 = vmatprep.subr.mxu0 0.0
  %134 = vmatpush1.msra.mxu0 0.0
  %135 = vmatprep.mubr.f32.mxu0 0.0
  %136 = vmatmul.mubr.f32.gmra.mrb[0].mxu0 %v65
  %v137 = vpop.f32.mrb[0].mxu0
  %v138 = vadd.f32 %v61, %v137
  %v139 = vpop.f32.mrb[0].mxu0
  %140 = vdwg.mxu0
  %vm141 = vcmp.gt.f32.partialorder %v138, 0.0
  %v142 = vmul.f32 %v138, 0.1
  %v143 = vsel %vm141, %v138, %v142
  %vm144 = vcmask 259072
  %145 = vst.msk [vmem:[%s13] sm:$0x3f] %vm144, %v143
  %v146 = vld [vmem:[%s3] sm:$0xff]
  %v147 = vld [vmem:[%s3 + $0x8] sm:$0xff]
  %v148 = vld [vmem:[%s3 + $0x10] sm:$0xff]
  %v149 = vld [vmem:[%s3 + $0x18] sm:$0xff]
  %v150 = vld [vmem:[%s4] sm:$0x1]
  %v152 = vlaneseq
  %v153 = vshrl.u32 %v152, 7
  %v154 = vsub.s32 0, %v153
  %v155 = vrot.slane %v150, %v154
  %vm157 = vcmask 261120
  %v159 = vsel %vm157, %v143, 0
  %161 = vmatprep.subr.mxu0 0.0
  %162 = vmatpush1.msra.mxu0 %v146
  %163 = vmatprep.subr.mxu0 0.0
  %164 = vmatpush1.msra.mxu0 %v147
  %165 = vmatprep.subr.mxu0 0.0
  %166 = vmatpush1.msra.mxu0 %v148
  %167 = vmatprep.subr.mxu0 0.0
  %168 = vmatpush1.msra.mxu0 %v149
  %169 = vmatprep.subr.mxu0 0.0
  %170 = vmatpush1.msra.mxu0 0.0
  %171 = vmatprep.subr.mxu0 0.0
  %172 = vmatpush1.msra.mxu0 0.0
  %173 = vmatprep.subr.mxu0 0.0
  %174 = vmatpush1.msra.mxu0 0.0
  %175 = vmatprep.subr.mxu0 0.0
  %176 = vmatpush1.msra.mxu0 0.0
  %177 = vmatprep.subr.mxu0 0.0
  %178 = vmatpush1.msra.mxu0 0.0
  %179 = vmatprep.subr.mxu0 0.0
  %180 = vmatpush1.msra.mxu0 0.0
  %181 = vmatprep.subr.mxu0 0.0
  %182 = vmatpush1.msra.mxu0 0.0
  %183 = vmatprep.subr.mxu0 0.0
  %184 = vmatpush1.msra.mxu0 0.0
  %185 = vmatprep.subr.mxu0 0.0
  %186 = vmatpush1.msra.mxu0 0.0
  %187 = vmatprep.subr.mxu0 0.0
  %188 = vmatpush1.msra.mxu0 0.0
  %189 = vmatprep.subr.mxu0 0.0
  %190 = vmatpush1.msra.mxu0 0.0
  %191 = vmatprep.subr.mxu0 0.0
  %192 = vmatpush1.msra.mxu0 0.0
  %193 = vmatprep.subr.mxu0 0.0
  %194 = vmatpush1.msra.mxu0 0.0
  %195 = vmatprep.subr.mxu0 0.0
  %196 = vmatpush1.msra.mxu0 0.0
  %197 = vmatprep.subr.mxu0 0.0
  %198 = vmatpush1.msra.mxu0 0.0
  %199 = vmatprep.subr.mxu0 0.0
  %200 = vmatpush1.msra.mxu0 0.0
  %201 = vmatprep.subr.mxu0 0.0
  %202 = vmatpush1.msra.mxu0 0.0
  %203 = vmatprep.subr.mxu0 0.0
  %204 = vmatpush1.msra.mxu0 0.0
  %205 = vmatprep.subr.mxu0 0.0
  %206 = vmatpush1.msra.mxu0 0.0
  %207 = vmatprep.subr.mxu0 0.0
  %208 = vmatpush1.msra.mxu0 0.0
  %209 = vmatprep.subr.mxu0 0.0
  %210 = vmatpush1.msra.mxu0 0.0
  %211 = vmatprep.subr.mxu0 0.0
  %212 = vmatpush1.msra.mxu0 0.0
  %213 = vmatprep.subr.mxu0 0.0
  %214 = vmatpush1.msra.mxu0 0.0
  %215 = vmatprep.subr.mxu0 0.0
  %216 = vmatpush1.msra.mxu0 0.0
  %217 = vmatprep.subr.mxu0 0.0
  %218 = vmatpush1.msra.mxu0 0.0
  %219 = vmatprep.subr.mxu0 0.0
  %220 = vmatpush1.msra.mxu0 0.0
  %221 = vmatprep.subr.mxu0 0.0
  %222 = vmatpush1.msra.mxu0 0.0
  %223 = vmatprep.subr.mxu0 0.0
  %224 = vmatpush1.msra.mxu0 0.0
  %225 = vmatprep.mubr.f32.mxu0 0.0
  %226 = vmatmul.mubr.f32.gmra.mrb[0].mxu0 %v159
  %v227 = vpop.f32.mrb[0].mxu0
  %v228 = vadd.f32 %v155, %v227
  %v229 = vpop.f32.mrb[0].mxu0
  %230 = vdwg.mxu0
  %vm231 = vcmp.gt.f32.partialorder %v228, 0.0
  %v232 = vmul.f32 %v228, 0.1
  %v233 = vsel %vm231, %v228, %v232
  %vm234 = vcmask 193536
  %235 = vst.msk [vmem:[%s14] sm:$0x3f] %vm234, %v233
  %v236 = vld [vmem:[%s5] sm:$0xff]
  %v237 = vld [vmem:[%s5 + $0x8] sm:$0xff]
  %v238 = vld [vmem:[%s5 + $0x10] sm:$0xff]
  %v239 = vld [vmem:[%s6] sm:$0x1]
  %v241 = vlaneseq
  %v242 = vshrl.u32 %v241, 7
  %v243 = vsub.s32 0, %v242
  %v244 = vrot.slane %v239, %v243
  %vm246 = vcmask 195584
  %v248 = vsel %vm246, %v233, 0
  %250 = vmatprep.subr.mxu0 0.0
  %251 = vmatpush1.msra.mxu0 %v236
  %252 = vmatprep.subr.mxu0 0.0
  %253 = vmatpush1.msra.mxu0 %v237
  %254 = vmatprep.subr.mxu0 0.0
  %255 = vmatpush1.msra.mxu0 %v238
  %256 = vmatprep.subr.mxu0 0.0
  %257 = vmatpush1.msra.mxu0 0.0
  %258 = vmatprep.subr.mxu0 0.0
  %259 = vmatpush1.msra.mxu0 0.0
  %260 = vmatprep.subr.mxu0 0.0
  %261 = vmatpush1.msra.mxu0 0.0
  %262 = vmatprep.subr.mxu0 0.0
  %263 = vmatpush1.msra.mxu0 0.0
  %264 = vmatprep.subr.mxu0 0.0
  %265 = vmatpush1.msra.mxu0 0.0
  %266 = vmatprep.subr.mxu0 0.0
  %267 = vmatpush1.msra.mxu0 0.0
  %268 = vmatprep.subr.mxu0 0.0
  %269 = vmatpush1.msra.mxu0 0.0
  %270 = vmatprep.subr.mxu0 0.0
  %271 = vmatpush1.msra.mxu0 0.0
  %272 = vmatprep.subr.mxu0 0.0
  %273 = vmatpush1.msra.mxu0 0.0
  %274 = vmatprep.subr.mxu0 0.0
  %275 = vmatpush1.msra.mxu0 0.0
  %276 = vmatprep.subr.mxu0 0.0
  %277 = vmatpush1.msra.mxu0 0.0
  %278 = vmatprep.subr.mxu0 0.0
  %279 = vmatpush1.msra.mxu0 0.0
  %280 = vmatprep.subr.mxu0 0.0
  %281 = vmatpush1.msra.mxu0 0.0
  %282 = vmatprep.subr.mxu0 0.0
  %283 = vmatpush1.msra.mxu0 0.0
  %284 = vmatprep.subr.mxu0 0.0
  %285 = vmatpush1.msra.mxu0 0.0
  %286 = vmatprep.subr.mxu0 0.0
  %287 = vmatpush1.msra.mxu0 0.0
  %288 = vmatprep.subr.mxu0 0.0
  %289 = vmatpush1.msra.mxu0 0.0
  %290 = vmatprep.subr.mxu0 0.0
  %291 = vmatpush1.msra.mxu0 0.0
  %292 = vmatprep.subr.mxu0 0.0
  %293 = vmatpush1.msra.mxu0 0.0
  %294 = vmatprep.subr.mxu0 0.0
  %295 = vmatpush1.msra.mxu0 0.0
  %296 = vmatprep.subr.mxu0 0.0
  %297 = vmatpush1.msra.mxu0 0.0
  %298 = vmatprep.subr.mxu0 0.0
  %299 = vmatpush1.msra.mxu0 0.0
  %300 = vmatprep.subr.mxu0 0.0
  %301 = vmatpush1.msra.mxu0 0.0
  %302 = vmatprep.subr.mxu0 0.0
  %303 = vmatpush1.msra.mxu0 0.0
  %304 = vmatprep.subr.mxu0 0.0
  %305 = vmatpush1.msra.mxu0 0.0
  %306 = vmatprep.subr.mxu0 0.0
  %307 = vmatpush1.msra.mxu0 0.0
  %308 = vmatprep.subr.mxu0 0.0
  %309 = vmatpush1.msra.mxu0 0.0
  %310 = vmatprep.subr.mxu0 0.0
  %311 = vmatpush1.msra.mxu0 0.0
  %312 = vmatprep.subr.mxu0 0.0
  %313 = vmatpush1.msra.mxu0 0.0
  %314 = vmatprep.mubr.f32.mxu0 0.0
  %315 = vmatmul.mubr.f32.gmra.mrb[0].mxu0 %v248
  %v316 = vpop.f32.mrb[0].mxu0
  %v317 = vadd.f32 %v244, %v316
  %v318 = vpop.f32.mrb[0].mxu0
  %319 = vdwg.mxu0
  %vm320 = vcmp.gt.f32.partialorder %v317, 0.0
  %v321 = vmul.f32 %v317, 0.1
  %v322 = vsel %vm320, %v317, %v321
  %vm323 = vcmask 128000
  %324 = vst.msk [vmem:[%s15] sm:$0x3f] %vm323, %v322
  %v325 = vld [vmem:[%s7] sm:$0xff]
  %v326 = vld [vmem:[%s7 + $0x8] sm:$0xff]
  %v327 = vld [vmem:[%s8] sm:$0x1]
  %v329 = vlaneseq
  %v330 = vshrl.u32 %v329, 7
  %v331 = vsub.s32 0, %v330
  %v332 = vrot.slane %v327, %v331
  %vm334 = vcmask 130048
  %v336 = vsel %vm334, %v322, 0
  %338 = vmatprep.subr.mxu0 0.0
  %339 = vmatpush1.msra.mxu0 %v325
  %340 = vmatprep.subr.mxu0 0.0
  %341 = vmatpush1.msra.mxu0 %v326
  %342 = vmatprep.subr.mxu0 0.0
  %343 = vmatpush1.msra.mxu0 0.0
  %344 = vmatprep.subr.mxu0 0.0
  %345 = vmatpush1.msra.mxu0 0.0
  %346 = vmatprep.subr.mxu0 0.0
  %347 = vmatpush1.msra.mxu0 0.0
  %348 = vmatprep.subr.mxu0 0.0
  %349 = vmatpush1.msra.mxu0 0.0
  %350 = vmatprep.subr.mxu0 0.0
  %351 = vmatpush1.msra.mxu0 0.0
  %352 = vmatprep.subr.mxu0 0.0
  %353 = vmatpush1.msra.mxu0 0.0
  %354 = vmatprep.subr.mxu0 0.0
  %355 = vmatpush1.msra.mxu0 0.0
  %356 = vmatprep.subr.mxu0 0.0
  %357 = vmatpush1.msra.mxu0 0.0
  %358 = vmatprep.subr.mxu0 0.0
  %359 = vmatpush1.msra.mxu0 0.0
  %360 = vmatprep.subr.mxu0 0.0
  %361 = vmatpush1.msra.mxu0 0.0
  %362 = vmatprep.subr.mxu0 0.0
  %363 = vmatpush1.msra.mxu0 0.0
  %364 = vmatprep.subr.mxu0 0.0
  %365 = vmatpush1.msra.mxu0 0.0
  %366 = vmatprep.subr.mxu0 0.0
  %367 = vmatpush1.msra.mxu0 0.0
  %368 = vmatprep.subr.mxu0 0.0
  %369 = vmatpush1.msra.mxu0 0.0
  %370 = vmatprep.subr.mxu0 0.0
  %371 = vmatpush1.msra.mxu0 0.0
  %372 = vmatprep.subr.mxu0 0.0
  %373 = vmatpush1.msra.mxu0 0.0
  %374 = vmatprep.subr.mxu0 0.0
  %375 = vmatpush1.msra.mxu0 0.0
  %376 = vmatprep.subr.mxu0 0.0
  %377 = vmatpush1.msra.mxu0 0.0
  %378 = vmatprep.subr.mxu0 0.0
  %379 = vmatpush1.msra.mxu0 0.0
  %380 = vmatprep.subr.mxu0 0.0
  %381 = vmatpush1.msra.mxu0 0.0
  %382 = vmatprep.subr.mxu0 0.0
  %383 = vmatpush1.msra.mxu0 0.0
  %384 = vmatprep.subr.mxu0 0.0
  %385 = vmatpush1.msra.mxu0 0.0
  %386 = vmatprep.subr.mxu0 0.0
  %387 = vmatpush1.msra.mxu0 0.0
  %388 = vmatprep.subr.mxu0 0.0
  %389 = vmatpush1.msra.mxu0 0.0
  %390 = vmatprep.subr.mxu0 0.0
  %391 = vmatpush1.msra.mxu0 0.0
  %392 = vmatprep.subr.mxu0 0.0
  %393 = vmatpush1.msra.mxu0 0.0
  %394 = vmatprep.subr.mxu0 0.0
  %395 = vmatpush1.msra.mxu0 0.0
  %396 = vmatprep.subr.mxu0 0.0
  %397 = vmatpush1.msra.mxu0 0.0
  %398 = vmatprep.subr.mxu0 0.0
  %399 = vmatpush1.msra.mxu0 0.0
  %400 = vmatprep.subr.mxu0 0.0
  %401 = vmatpush1.msra.mxu0 0.0
  %402 = vmatprep.mubr.f32.mxu0 0.0
  %403 = vmatmul.mubr.f32.gmra.mrb[0].mxu0 %v336
  %v404 = vpop.f32.mrb[0].mxu0
  %v405 = vadd.f32 %v332, %v404
  %v406 = vpop.f32.mrb[0].mxu0
  %407 = vdwg.mxu0
  %vm408 = vcmp.gt.f32.partialorder %v405, 0.0
  %v409 = vmul.f32 %v405, 0.1
  %v410 = vsel %vm408, %v405, %v409
  %411 = vst.msk [vmem:[%s16] sm:$0x3f] %vm144, %v410
  %v412 = vld [vmem:[%s9] sm:$0xff]
  %v413 = vld [vmem:[%s9 + $0x8] sm:$0xff]
  %v414 = vld [vmem:[%s9 + $0x10] sm:$0xff]
  %v415 = vld [vmem:[%s9 + $0x18] sm:$0xff]
  %v416 = vld [vmem:[%s10] sm:$0x1]
  %v418 = vlaneseq
  %v419 = vshrl.u32 %v418, 7
  %v420 = vsub.s32 0, %v419
  %v421 = vrot.slane %v416, %v420
  %v424 = vsel %vm157, %v410, 0
  %426 = vmatprep.subr.mxu0 0.0
  %427 = vmatpush1.msra.mxu0 %v412
  %428 = vmatprep.subr.mxu0 0.0
  %429 = vmatpush1.msra.mxu0 %v413
  %430 = vmatprep.subr.mxu0 0.0
  %431 = vmatpush1.msra.mxu0 %v414
  %432 = vmatprep.subr.mxu0 0.0
  %433 = vmatpush1.msra.mxu0 %v415
  %434 = vmatprep.subr.mxu0 0.0
  %435 = vmatpush1.msra.mxu0 0.0
  %436 = vmatprep.subr.mxu0 0.0
  %437 = vmatpush1.msra.mxu0 0.0
  %438 = vmatprep.subr.mxu0 0.0
  %439 = vmatpush1.msra.mxu0 0.0
  %440 = vmatprep.subr.mxu0 0.0
  %441 = vmatpush1.msra.mxu0 0.0
  %442 = vmatprep.subr.mxu0 0.0
  %443 = vmatpush1.msra.mxu0 0.0
  %444 = vmatprep.subr.mxu0 0.0
  %445 = vmatpush1.msra.mxu0 0.0
  %446 = vmatprep.subr.mxu0 0.0
  %447 = vmatpush1.msra.mxu0 0.0
  %448 = vmatprep.subr.mxu0 0.0
  %449 = vmatpush1.msra.mxu0 0.0
  %450 = vmatprep.subr.mxu0 0.0
  %451 = vmatpush1.msra.mxu0 0.0
  %452 = vmatprep.subr.mxu0 0.0
  %453 = vmatpush1.msra.mxu0 0.0
  %454 = vmatprep.subr.mxu0 0.0
  %455 = vmatpush1.msra.mxu0 0.0
  %456 = vmatprep.subr.mxu0 0.0
  %457 = vmatpush1.msra.mxu0 0.0
  %458 = vmatprep.subr.mxu0 0.0
  %459 = vmatpush1.msra.mxu0 0.0
  %460 = vmatprep.subr.mxu0 0.0
  %461 = vmatpush1.msra.mxu0 0.0
  %462 = vmatprep.subr.mxu0 0.0
  %463 = vmatpush1.msra.mxu0 0.0
  %464 = vmatprep.subr.mxu0 0.0
  %465 = vmatpush1.msra.mxu0 0.0
  %466 = vmatprep.subr.mxu0 0.0
  %467 = vmatpush1.msra.mxu0 0.0
  %468 = vmatprep.subr.mxu0 0.0
  %469 = vmatpush1.msra.mxu0 0.0
  %470 = vmatprep.subr.mxu0 0.0
  %471 = vmatpush1.msra.mxu0 0.0
  %472 = vmatprep.subr.mxu0 0.0
  %473 = vmatpush1.msra.mxu0 0.0
  %474 = vmatprep.subr.mxu0 0.0
  %475 = vmatpush1.msra.mxu0 0.0
  %476 = vmatprep.subr.mxu0 0.0
  %477 = vmatpush1.msra.mxu0 0.0
  %478 = vmatprep.subr.mxu0 0.0
  %479 = vmatpush1.msra.mxu0 0.0
  %480 = vmatprep.subr.mxu0 0.0
  %481 = vmatpush1.msra.mxu0 0.0
  %482 = vmatprep.subr.mxu0 0.0
  %483 = vmatpush1.msra.mxu0 0.0
  %484 = vmatprep.subr.mxu0 0.0
  %485 = vmatpush1.msra.mxu0 0.0
  %486 = vmatprep.subr.mxu0 0.0
  %487 = vmatpush1.msra.mxu0 0.0
  %488 = vmatprep.subr.mxu0 0.0
  %489 = vmatpush1.msra.mxu0 0.0
  %490 = vmatprep.mubr.f32.mxu0 0.0
  %491 = vmatmul.mubr.f32.gmra.mrb[0].mxu0 %v424
  %v492 = vpop.f32.mrb[0].mxu0
  %v493 = vadd.f32 %v421, %v492
  %v494 = vpop.f32.mrb[0].mxu0
  %495 = vdwg.mxu0
  %vm496 = vcmp.gt.f32.partialorder %v493, 0.0
  %v497 = vmul.f32 %v493, 0.1
  %v498 = vsel %vm496, %v493, %v497
  %499 = vst.msk [vmem:[%s17] sm:$0x3f] %vm144, %v498
  %v500 = vld [vmem:[%s11] sm:$0xff]
  %v501 = vld [vmem:[%s11 + $0x8] sm:$0xff]
  %v502 = vld [vmem:[%s11 + $0x10] sm:$0xff]
  %v503 = vld [vmem:[%s11 + $0x18] sm:$0xff]
  %v504 = vld [vmem:[#allocation2] sm:$0x1]
  %v506 = vlaneseq
  %v507 = vshrl.u32 %v506, 7
  %v508 = vsub.s32 0, %v507
  %v509 = vrot.slane %v504, %v508
  %v512 = vsel %vm157, %v498, 0
  %514 = vmatprep.subr.mxu0 0.0
  %515 = vmatpush1.msra.mxu0 %v500
  %516 = vmatprep.subr.mxu0 0.0
  %517 = vmatpush1.msra.mxu0 %v501
  %518 = vmatprep.subr.mxu0 0.0
  %519 = vmatpush1.msra.mxu0 %v502
  %520 = vmatprep.subr.mxu0 0.0
  %521 = vmatpush1.msra.mxu0 %v503
  %522 = vmatprep.subr.mxu0 0.0
  %523 = vmatpush1.msra.mxu0 0.0
  %524 = vmatprep.subr.mxu0 0.0
  %525 = vmatpush1.msra.mxu0 0.0
  %526 = vmatprep.subr.mxu0 0.0
  %527 = vmatpush1.msra.mxu0 0.0
  %528 = vmatprep.subr.mxu0 0.0
  %529 = vmatpush1.msra.mxu0 0.0
  %530 = vmatprep.subr.mxu0 0.0
  %531 = vmatpush1.msra.mxu0 0.0
  %532 = vmatprep.subr.mxu0 0.0
  %533 = vmatpush1.msra.mxu0 0.0
  %534 = vmatprep.subr.mxu0 0.0
  %535 = vmatpush1.msra.mxu0 0.0
  %536 = vmatprep.subr.mxu0 0.0
  %537 = vmatpush1.msra.mxu0 0.0
  %538 = vmatprep.subr.mxu0 0.0
  %539 = vmatpush1.msra.mxu0 0.0
  %540 = vmatprep.subr.mxu0 0.0
  %541 = vmatpush1.msra.mxu0 0.0
  %542 = vmatprep.subr.mxu0 0.0
  %543 = vmatpush1.msra.mxu0 0.0
  %544 = vmatprep.subr.mxu0 0.0
  %545 = vmatpush1.msra.mxu0 0.0
  %546 = vmatprep.subr.mxu0 0.0
  %547 = vmatpush1.msra.mxu0 0.0
  %548 = vmatprep.subr.mxu0 0.0
  %549 = vmatpush1.msra.mxu0 0.0
  %550 = vmatprep.subr.mxu0 0.0
  %551 = vmatpush1.msra.mxu0 0.0
  %552 = vmatprep.subr.mxu0 0.0
  %553 = vmatpush1.msra.mxu0 0.0
  %554 = vmatprep.subr.mxu0 0.0
  %555 = vmatpush1.msra.mxu0 0.0
  %556 = vmatprep.subr.mxu0 0.0
  %557 = vmatpush1.msra.mxu0 0.0
  %558 = vmatprep.subr.mxu0 0.0
  %559 = vmatpush1.msra.mxu0 0.0
  %560 = vmatprep.subr.mxu0 0.0
  %561 = vmatpush1.msra.mxu0 0.0
  %562 = vmatprep.subr.mxu0 0.0
  %563 = vmatpush1.msra.mxu0 0.0
  %564 = vmatprep.subr.mxu0 0.0
  %565 = vmatpush1.msra.mxu0 0.0
  %566 = vmatprep.subr.mxu0 0.0
  %567 = vmatpush1.msra.mxu0 0.0
  %568 = vmatprep.subr.mxu0 0.0
  %569 = vmatpush1.msra.mxu0 0.0
  %570 = vmatprep.subr.mxu0 0.0
  %571 = vmatpush1.msra.mxu0 0.0
  %572 = vmatprep.subr.mxu0 0.0
  %573 = vmatpush1.msra.mxu0 0.0
  %574 = vmatprep.subr.mxu0 0.0
  %575 = vmatpush1.msra.mxu0 0.0
  %576 = vmatprep.subr.mxu0 0.0
  %577 = vmatpush1.msra.mxu0 0.0
  %578 = vmatprep.mubr.f32.mxu0 0.0
  %579 = vmatmul.mubr.f32.gmra.mrb[0].mxu0 %v512
  %v580 = vpop.f32.mrb[0].mxu0
  %v581 = vadd.f32 %v509, %v580
  %v582 = vpop.f32.mrb[0].mxu0
  %583 = vdwg.mxu0
  %vm584 = vcmask 5120
  %585 = vst.msk [vmem:[%s18] sm:$0x3f] %vm584, %v581
  // Predicated region
  $region54: #{_lambda_.4} parent=0 // pred_check
    _
  $region55: #{_lambda_.4} parent=0 // pred_check_branch
    %587 = sbr.rel (0) target = $region57
  $region56: #{_lambda_.4} parent=0 // pred_region
    _
  $region57: #{_lambda_.4} parent=0 // pred_fallthru
    _
  // Predicated region
  $region58: #{_lambda_.4} parent=0 // pred_check
    _
  $region59: #{_lambda_.4} parent=0 // pred_check_branch
    %589 = sbr.rel (0) target = $region61
  $region60: #{_lambda_.4} parent=0 // pred_region
    _
  $region61: #{_lambda_.4} parent=0 // pred_fallthru
    _
  // Predicated region
  $region62: #{_lambda_.4} parent=0 // pred_check
    _
  $region63: #{_lambda_.4} parent=0 // pred_check_branch
    %591 = sbr.rel (0) target = $region65
  $region64: #{_lambda_.4} parent=0 // pred_region
    _
  $region65: #{_lambda_.4} parent=0 // pred_fallthru
    _
  // Predicated region
  $region66: #{_lambda_.4} parent=0 // pred_check
    _
  $region67: #{_lambda_.4} parent=0 // pred_check_branch
    %593 = sbr.rel (0) target = $region69
  $region68: #{_lambda_.4} parent=0 // pred_region
    _
  $region69: #{_lambda_.4} parent=0 // pred_fallthru
    _
  // Predicated region
  $region70: #{_lambda_.4} parent=0 // pred_check
    _
  $region71: #{_lambda_.4} parent=0 // pred_check_branch
    %595 = sbr.rel (0) target = $region73
  $region72: #{_lambda_.4} parent=0 // pred_region
    _
  $region73: #{_lambda_.4} parent=0 // pred_fallthru
    _
  // Predicated region
  $region74: #{_lambda_.4} parent=0 // pred_check
    _
  $region75: #{_lambda_.4} parent=0 // pred_check_branch
    %597 = sbr.rel (0) target = $region77
  $region76: #{_lambda_.4} parent=0 // pred_region
    _
  $region77: #{_lambda_.4} parent=0 // pred_fallthru
    _
  // Predicated region
  $region78: #{_lambda_.4} parent=0 // pred_check
    _
  $region79: #{_lambda_.4} parent=0 // pred_check_branch
    %599 = sbr.rel (0) target = $region81
  $region80: #{_lambda_.4} parent=0 // pred_region
    _
  $region81: #{_lambda_.4} parent=0 // pred_fallthru
    _
  // Predicated region
  $region82: #{_lambda_.4} parent=0 // pred_check
    _
  $region83: #{_lambda_.4} parent=0 // pred_check_branch
    %601 = sbr.rel (0) target = $region85
  $region84: #{_lambda_.4} parent=0 // pred_region
    _
  $region85: #{_lambda_.4} parent=0 // pred_fallthru
    _
  // Predicated region
  $region86: #{_lambda_.4} parent=0 // pred_check
    _
  $region87: #{_lambda_.4} parent=0 // pred_check_branch
    %603 = sbr.rel (0) target = $region89
  $region88: #{_lambda_.4} parent=0 // pred_region
    _
  $region89: #{_lambda_.4} parent=0 // pred_fallthru
    _
  // Predicated region
  $region90: #{_lambda_.4} parent=0 // pred_check
    _
  $region91: #{_lambda_.4} parent=0 // pred_check_branch
    %605 = sbr.rel (0) target = $region93
  $region92: #{_lambda_.4} parent=0 // pred_region
    _
  $region93: #{_lambda_.4} parent=0 // pred_fallthru
    _
  // Predicated region
  $region94: #{_lambda_.4} parent=0 // pred_check
    _
  $region95: #{_lambda_.4} parent=0 // pred_check_branch
    %607 = sbr.rel (0) target = $region97
  $region96: #{_lambda_.4} parent=0 // pred_region
    _
  $region97: #{_lambda_.4} parent=0 // pred_fallthru
    _
  // Predicated region
  $region98: #{_lambda_.4} parent=0 // pred_check
    _
  $region99: #{_lambda_.4} parent=0 // pred_check_branch
    %609 = sbr.rel (0) target = $region101
  $region100: #{_lambda_.4} parent=0 // pred_region
    _
  $region101: #{_lambda_.4} parent=0 // pred_fallthru
    _

// kernel: _lambda_.5
$region0: #{_lambda_.5}
  #allocation0 [shape = 'u32[]', space=smem, size = 0x4, offset = 0x4, fixed_abs, tag = 'smem constant byte address 0x4 - core index']
  #allocation1 [shape = 'u32[144,128]{1,0:T(1,128)}', space=vmem, size = 0x12000, scoped, tag = 'internal scratch']
  #allocation2 [shape = 'f32[1,1]{1,0:T(1,128)S(1)}', space=vmem, size = 0x200, scoped, tag = 'scoped memory for _lambda_.5']
  %s0 = inlined_call_operand.vmem [shape: f32[10,13], index: 0, kind: input, shape index: {}]
  %s1 = inlined_call_operand.vmem [shape: f32[13,20], index: 1, kind: input, shape index: {}]
  %s2 = inlined_call_operand.vmem [shape: f32[1,20], index: 2, kind: input, shape index: {}]
  %s3 = inlined_call_operand.vmem [shape: f32[20,16], index: 3, kind: input, shape index: {}]
  %s4 = inlined_call_operand.vmem [shape: f32[1,16], index: 4, kind: input, shape index: {}]
  %s5 = inlined_call_operand.vmem [shape: f32[16,16], index: 5, kind: input, shape index: {}]
  %s6 = inlined_call_operand.vmem [shape: f32[1,16], index: 6, kind: input, shape index: {}]
  %s7 = inlined_call_operand.vmem [shape: f32[16,32], index: 7, kind: input, shape index: {}]
  %s8 = inlined_call_operand.vmem [shape: f32[1,32], index: 8, kind: input, shape index: {}]
  %s9 = inlined_call_operand.vmem [shape: f32[32,32], index: 9, kind: input, shape index: {}]
  %s10 = inlined_call_operand.vmem [shape: f32[1,32], index: 10, kind: input, shape index: {}]
  %s11 = inlined_call_operand.vmem [shape: f32[32,1], index: 11, kind: input, shape index: {}]
  %s12 = inlined_call_operand.<no memory space> [shape: f32[1,1], index: 12, kind: input, shape index: {}]
  %s13 = inlined_call_operand.vmem [shape: f32[10,20], index: 13, kind: output, shape index: {0}]
  %s14 = inlined_call_operand.vmem [shape: f32[10,16], index: 14, kind: output, shape index: {1}]
  %s15 = inlined_call_operand.vmem [shape: f32[10,16], index: 15, kind: output, shape index: {2}]
  %s16 = inlined_call_operand.vmem [shape: f32[10,32], index: 16, kind: output, shape index: {3}]
  %s17 = inlined_call_operand.vmem [shape: f32[10,32], index: 17, kind: output, shape index: {4}]
  %s18 = inlined_call_operand.vmem [shape: f32[10,1], index: 18, kind: output, shape index: {5}]
  %19 = xla_tuple %s13, %s14, %s15, %s16, %s17, %s18
  %s20 = sld [smem:[#allocation0]]
  $region102: #{_lambda_.5} parent=0
    _
  %s22 = ssub.s32 1, %s20
  %s23 = scalar_select 0, %s22, %s20
  %v24 = vstv %s12
  %25 = vst [vmem:[#allocation2] sm:$0x1] %v24
  // Predicated region
  $region2: #{_lambda_.5} parent=0 // pred_check
    _
  $region3: #{_lambda_.5} parent=0 // pred_check_branch
    %27 = sbr.rel (0) target = $region5
  $region4: #{_lambda_.5} parent=0 // pred_region
    _
  $region5: #{_lambda_.5} parent=0 // pred_fallthru
    _
  // Predicated region
  $region6: #{_lambda_.5} parent=0 // pred_check
    _
  $region7: #{_lambda_.5} parent=0 // pred_check_branch
    %29 = sbr.rel (0) target = $region9
  $region8: #{_lambda_.5} parent=0 // pred_region
    _
  $region9: #{_lambda_.5} parent=0 // pred_fallthru
    _
  // Predicated region
  $region10: #{_lambda_.5} parent=0 // pred_check
    _
  $region11: #{_lambda_.5} parent=0 // pred_check_branch
    %31 = sbr.rel (0) target = $region13
  $region12: #{_lambda_.5} parent=0 // pred_region
    _
  $region13: #{_lambda_.5} parent=0 // pred_fallthru
    _
  // Predicated region
  $region14: #{_lambda_.5} parent=0 // pred_check
    _
  $region15: #{_lambda_.5} parent=0 // pred_check_branch
    %33 = sbr.rel (0) target = $region17
  $region16: #{_lambda_.5} parent=0 // pred_region
    _
  $region17: #{_lambda_.5} parent=0 // pred_fallthru
    _
  // Predicated region
  $region18: #{_lambda_.5} parent=0 // pred_check
    _
  $region19: #{_lambda_.5} parent=0 // pred_check_branch
    %35 = sbr.rel (0) target = $region21
  $region20: #{_lambda_.5} parent=0 // pred_region
    _
  $region21: #{_lambda_.5} parent=0 // pred_fallthru
    _
  // Predicated region
  $region22: #{_lambda_.5} parent=0 // pred_check
    _
  $region23: #{_lambda_.5} parent=0 // pred_check_branch
    %37 = sbr.rel (0) target = $region25
  $region24: #{_lambda_.5} parent=0 // pred_region
    _
  $region25: #{_lambda_.5} parent=0 // pred_fallthru
    _
  // Predicated region
  $region26: #{_lambda_.5} parent=0 // pred_check
    _
  $region27: #{_lambda_.5} parent=0 // pred_check_branch
    %39 = sbr.rel (0) target = $region29
  $region28: #{_lambda_.5} parent=0 // pred_region
    _
  $region29: #{_lambda_.5} parent=0 // pred_fallthru
    _
  // Predicated region
  $region30: #{_lambda_.5} parent=0 // pred_check
    _
  $region31: #{_lambda_.5} parent=0 // pred_check_branch
    %41 = sbr.rel (0) target = $region33
  $region32: #{_lambda_.5} parent=0 // pred_region
    _
  $region33: #{_lambda_.5} parent=0 // pred_fallthru
    _
  // Predicated region
  $region34: #{_lambda_.5} parent=0 // pred_check
    _
  $region35: #{_lambda_.5} parent=0 // pred_check_branch
    %43 = sbr.rel (0) target = $region37
  $region36: #{_lambda_.5} parent=0 // pred_region
    _
  $region37: #{_lambda_.5} parent=0 // pred_fallthru
    _
  // Predicated region
  $region38: #{_lambda_.5} parent=0 // pred_check
    _
  $region39: #{_lambda_.5} parent=0 // pred_check_branch
    %45 = sbr.rel (0) target = $region41
  $region40: #{_lambda_.5} parent=0 // pred_region
    _
  $region41: #{_lambda_.5} parent=0 // pred_fallthru
    _
  // Predicated region
  $region42: #{_lambda_.5} parent=0 // pred_check
    _
  $region43: #{_lambda_.5} parent=0 // pred_check_branch
    %47 = sbr.rel (0) target = $region45
  $region44: #{_lambda_.5} parent=0 // pred_region
    _
  $region45: #{_lambda_.5} parent=0 // pred_fallthru
    _
  // Predicated region
  $region46: #{_lambda_.5} parent=0 // pred_check
    _
  $region47: #{_lambda_.5} parent=0 // pred_check_branch
    %49 = sbr.rel (0) target = $region49
  $region48: #{_lambda_.5} parent=0 // pred_region
    _
  $region49: #{_lambda_.5} parent=0 // pred_fallthru
    _
  // Predicated region
  $region50: #{_lambda_.5} parent=0 // pred_check
    _
  $region51: #{_lambda_.5} parent=0 // pred_check_branch
    %51 = sbr.rel (0) target = $region53
  $region52: #{_lambda_.5} parent=0 // pred_region
    _
  $region53: #{_lambda_.5} parent=0 // pred_fallthru
    _
  %v52 = vld [vmem:[%s0] sm:$0xff]
  %v53 = vld [vmem:[%s0 + $0x8] sm:$0x3]
  %v54 = vld [vmem:[%s1] sm:$0xff]
  %v55 = vld [vmem:[%s1 + $0x8] sm:$0x1f]
  %v56 = vld [vmem:[%s2] sm:$0x1]
  %v58 = vlaneseq
  %v59 = vshrl.u32 %v58, 7
  %v60 = vsub.s32 0, %v59
  %v61 = vrot.slane %v56, %v60
  %vm63 = vcmask 105472
  %v65 = vsel %vm63, %v52, 0
  %v68 = vsel %vm63, %v53, 0
  %vm70 = vcmask 1044480
  %v72 = vsel %vm70, %v55, 0
  %74 = vmatprep.subr.mxu0 0.0
  %75 = vmatpush1.msra.mxu0 %v54
  %76 = vmatprep.subr.mxu0 0.0
  %77 = vmatpush1.msra.mxu0 %v72
  %78 = vmatprep.subr.mxu0 0.0
  %79 = vmatpush1.msra.mxu0 0.0
  %80 = vmatprep.subr.mxu0 0.0
  %81 = vmatpush1.msra.mxu0 0.0
  %82 = vmatprep.subr.mxu0 0.0
  %83 = vmatpush1.msra.mxu0 0.0
  %84 = vmatprep.subr.mxu0 0.0
  %85 = vmatpush1.msra.mxu0 0.0
  %86 = vmatprep.subr.mxu0 0.0
  %87 = vmatpush1.msra.mxu0 0.0
  %88 = vmatprep.subr.mxu0 0.0
  %89 = vmatpush1.msra.mxu0 0.0
  %90 = vmatprep.subr.mxu0 0.0
  %91 = vmatpush1.msra.mxu0 0.0
  %92 = vmatprep.subr.mxu0 0.0
  %93 = vmatpush1.msra.mxu0 0.0
  %94 = vmatprep.subr.mxu0 0.0
  %95 = vmatpush1.msra.mxu0 0.0
  %96 = vmatprep.subr.mxu0 0.0
  %97 = vmatpush1.msra.mxu0 0.0
  %98 = vmatprep.subr.mxu0 0.0
  %99 = vmatpush1.msra.mxu0 0.0
  %100 = vmatprep.subr.mxu0 0.0
  %101 = vmatpush1.msra.mxu0 0.0
  %102 = vmatprep.subr.mxu0 0.0
  %103 = vmatpush1.msra.mxu0 0.0
  %104 = vmatprep.subr.mxu0 0.0
  %105 = vmatpush1.msra.mxu0 0.0
  %106 = vmatprep.subr.mxu0 0.0
  %107 = vmatpush1.msra.mxu0 0.0
  %108 = vmatprep.subr.mxu0 0.0
  %109 = vmatpush1.msra.mxu0 0.0
  %110 = vmatprep.subr.mxu0 0.0
  %111 = vmatpush1.msra.mxu0 0.0
  %112 = vmatprep.subr.mxu0 0.0
  %113 = vmatpush1.msra.mxu0 0.0
  %114 = vmatprep.subr.mxu0 0.0
  %115 = vmatpush1.msra.mxu0 0.0
  %116 = vmatprep.subr.mxu0 0.0
  %117 = vmatpush1.msra.mxu0 0.0
  %118 = vmatprep.subr.mxu0 0.0
  %119 = vmatpush1.msra.mxu0 0.0
  %120 = vmatprep.subr.mxu0 0.0
  %121 = vmatpush1.msra.mxu0 0.0
  %122 = vmatprep.subr.mxu0 0.0
  %123 = vmatpush1.msra.mxu0 0.0
  %124 = vmatprep.subr.mxu0 0.0
  %125 = vmatpush1.msra.mxu0 0.0
  %126 = vmatprep.subr.mxu0 0.0
  %127 = vmatpush1.msra.mxu0 0.0
  %128 = vmatprep.subr.mxu0 0.0
  %129 = vmatpush1.msra.mxu0 0.0
  %130 = vmatprep.subr.mxu0 0.0
  %131 = vmatpush1.msra.mxu0 0.0
  %132 = vmatprep.subr.mxu0 0.0
  %133 = vmatpush1.msra.mxu0 0.0
  %134 = vmatprep.subr.mxu0 0.0
  %135 = vmatpush1.msra.mxu0 0.0
  %136 = vmatprep.subr.mxu0 0.0
  %137 = vmatpush1.msra.mxu0 0.0
  %138 = vmatprep.mubr.f32.mxu0 0.0
  %139 = vmatmul.mubr.f32.gmra.mrb[0].mxu0 %v65
  %v140 = vpop.f32.mrb[0].mxu0
  %v141 = vadd.f32 %v61, %v140
  %v142 = vpop.f32.mrb[0].mxu0
  %143 = vmatprep.mubr.f32.mxu0 0.0
  %144 = vmatmul.mubr.f32.gmra.mrb[0].mxu0 %v68
  %v145 = vpop.f32.mrb[0].mxu0
  %v146 = vadd.f32 %v61, %v145
  %v147 = vpop.f32.mrb[0].mxu0
  %148 = vdwg.mxu0
  %vm149 = vcmp.gt.f32.partialorder %v141, 0.0
  %vm150 = vcmp.gt.f32.partialorder %v146, 0.0
  %v151 = vmul.f32 %v141, 0.1
  %v152 = vmul.f32 %v146, 0.1
  %v153 = vsel %vm149, %v141, %v151
  %v154 = vsel %vm150, %v146, %v152
  %vm155 = vcmask 162816
  %156 = vst.msk [vmem:[%s13] sm:$0xff] %vm155, %v153
  %vm157 = vcmask 156672
  %158 = vst.msk [vmem:[%s13 + $0x8] sm:$0x3] %vm157, %v154
  %v159 = vld [vmem:[%s3] sm:$0xff]
  %v160 = vld [vmem:[%s3 + $0x8] sm:$0xff]
  %v161 = vld [vmem:[%s3 + $0x10] sm:$0xf]
  %v162 = vld [vmem:[%s4] sm:$0x1]
  %v164 = vlaneseq
  %v165 = vshrl.u32 %v164, 7
  %v166 = vsub.s32 0, %v165
  %v167 = vrot.slane %v162, %v166
  %v170 = vsel %vm155, %v153, 0
  %v173 = vsel %vm155, %v154, 0
  %vm175 = vcmask 1043456
  %v177 = vsel %vm175, %v161, 0
  %179 = vmatprep.subr.mxu0 0.0
  %180 = vmatpush1.msra.mxu0 %v159
  %181 = vmatprep.subr.mxu0 0.0
  %182 = vmatpush1.msra.mxu0 %v160
  %183 = vmatprep.subr.mxu0 0.0
  %184 = vmatpush1.msra.mxu0 %v177
  %185 = vmatprep.subr.mxu0 0.0
  %186 = vmatpush1.msra.mxu0 0.0
  %187 = vmatprep.subr.mxu0 0.0
  %188 = vmatpush1.msra.mxu0 0.0
  %189 = vmatprep.subr.mxu0 0.0
  %190 = vmatpush1.msra.mxu0 0.0
  %191 = vmatprep.subr.mxu0 0.0
  %192 = vmatpush1.msra.mxu0 0.0
  %193 = vmatprep.subr.mxu0 0.0
  %194 = vmatpush1.msra.mxu0 0.0
  %195 = vmatprep.subr.mxu0 0.0
  %196 = vmatpush1.msra.mxu0 0.0
  %197 = vmatprep.subr.mxu0 0.0
  %198 = vmatpush1.msra.mxu0 0.0
  %199 = vmatprep.subr.mxu0 0.0
  %200 = vmatpush1.msra.mxu0 0.0
  %201 = vmatprep.subr.mxu0 0.0
  %202 = vmatpush1.msra.mxu0 0.0
  %203 = vmatprep.subr.mxu0 0.0
  %204 = vmatpush1.msra.mxu0 0.0
  %205 = vmatprep.subr.mxu0 0.0
  %206 = vmatpush1.msra.mxu0 0.0
  %207 = vmatprep.subr.mxu0 0.0
  %208 = vmatpush1.msra.mxu0 0.0
  %209 = vmatprep.subr.mxu0 0.0
  %210 = vmatpush1.msra.mxu0 0.0
  %211 = vmatprep.subr.mxu0 0.0
  %212 = vmatpush1.msra.mxu0 0.0
  %213 = vmatprep.subr.mxu0 0.0
  %214 = vmatpush1.msra.mxu0 0.0
  %215 = vmatprep.subr.mxu0 0.0
  %216 = vmatpush1.msra.mxu0 0.0
  %217 = vmatprep.subr.mxu0 0.0
  %218 = vmatpush1.msra.mxu0 0.0
  %219 = vmatprep.subr.mxu0 0.0
  %220 = vmatpush1.msra.mxu0 0.0
  %221 = vmatprep.subr.mxu0 0.0
  %222 = vmatpush1.msra.mxu0 0.0
  %223 = vmatprep.subr.mxu0 0.0
  %224 = vmatpush1.msra.mxu0 0.0
  %225 = vmatprep.subr.mxu0 0.0
  %226 = vmatpush1.msra.mxu0 0.0
  %227 = vmatprep.subr.mxu0 0.0
  %228 = vmatpush1.msra.mxu0 0.0
  %229 = vmatprep.subr.mxu0 0.0
  %230 = vmatpush1.msra.mxu0 0.0
  %231 = vmatprep.subr.mxu0 0.0
  %232 = vmatpush1.msra.mxu0 0.0
  %233 = vmatprep.subr.mxu0 0.0
  %234 = vmatpush1.msra.mxu0 0.0
  %235 = vmatprep.subr.mxu0 0.0
  %236 = vmatpush1.msra.mxu0 0.0
  %237 = vmatprep.subr.mxu0 0.0
  %238 = vmatpush1.msra.mxu0 0.0
  %239 = vmatprep.subr.mxu0 0.0
  %240 = vmatpush1.msra.mxu0 0.0
  %241 = vmatprep.subr.mxu0 0.0
  %242 = vmatpush1.msra.mxu0 0.0
  %243 = vmatprep.mubr.f32.mxu0 0.0
  %244 = vmatmul.mubr.f32.gmra.mrb[0].mxu0 %v170
  %v245 = vpop.f32.mrb[0].mxu0
  %v246 = vadd.f32 %v167, %v245
  %v247 = vpop.f32.mrb[0].mxu0
  %248 = vmatprep.mubr.f32.mxu0 0.0
  %249 = vmatmul.mubr.f32.gmra.mrb[0].mxu0 %v173
  %v250 = vpop.f32.mrb[0].mxu0
  %v251 = vadd.f32 %v167, %v250
  %v252 = vpop.f32.mrb[0].mxu0
  %253 = vdwg.mxu0
  %vm254 = vcmp.gt.f32.partialorder %v246, 0.0
  %vm255 = vcmp.gt.f32.partialorder %v251, 0.0
  %v256 = vmul.f32 %v246, 0.1
  %v257 = vmul.f32 %v251, 0.1
  %v258 = vsel %vm254, %v246, %v256
  %v259 = vsel %vm255, %v251, %v257
  %vm260 = vcmask 130048
  %261 = vst.msk [vmem:[%s14] sm:$0xff] %vm260, %v258
  %vm262 = vcmask 123904
  %263 = vst.msk [vmem:[%s14 + $0x8] sm:$0x3] %vm262, %v259
  %v264 = vld [vmem:[%s5] sm:$0xff]
  %v265 = vld [vmem:[%s5 + $0x8] sm:$0xff]
  %v266 = vld [vmem:[%s6] sm:$0x1]
  %v268 = vlaneseq
  %v269 = vshrl.u32 %v268, 7
  %v270 = vsub.s32 0, %v269
  %v271 = vrot.slane %v266, %v270
  %v274 = vsel %vm260, %v258, 0
  %v277 = vsel %vm260, %v259, 0
  %279 = vmatprep.subr.mxu0 0.0
  %280 = vmatpush1.msra.mxu0 %v264
  %281 = vmatprep.subr.mxu0 0.0
  %282 = vmatpush1.msra.mxu0 %v265
  %283 = vmatprep.subr.mxu0 0.0
  %284 = vmatpush1.msra.mxu0 0.0
  %285 = vmatprep.subr.mxu0 0.0
  %286 = vmatpush1.msra.mxu0 0.0
  %287 = vmatprep.subr.mxu0 0.0
  %288 = vmatpush1.msra.mxu0 0.0
  %289 = vmatprep.subr.mxu0 0.0
  %290 = vmatpush1.msra.mxu0 0.0
  %291 = vmatprep.subr.mxu0 0.0
  %292 = vmatpush1.msra.mxu0 0.0
  %293 = vmatprep.subr.mxu0 0.0
  %294 = vmatpush1.msra.mxu0 0.0
  %295 = vmatprep.subr.mxu0 0.0
  %296 = vmatpush1.msra.mxu0 0.0
  %297 = vmatprep.subr.mxu0 0.0
  %298 = vmatpush1.msra.mxu0 0.0
  %299 = vmatprep.subr.mxu0 0.0
  %300 = vmatpush1.msra.mxu0 0.0
  %301 = vmatprep.subr.mxu0 0.0
  %302 = vmatpush1.msra.mxu0 0.0
  %303 = vmatprep.subr.mxu0 0.0
  %304 = vmatpush1.msra.mxu0 0.0
  %305 = vmatprep.subr.mxu0 0.0
  %306 = vmatpush1.msra.mxu0 0.0
  %307 = vmatprep.subr.mxu0 0.0
  %308 = vmatpush1.msra.mxu0 0.0
  %309 = vmatprep.subr.mxu0 0.0
  %310 = vmatpush1.msra.mxu0 0.0
  %311 = vmatprep.subr.mxu0 0.0
  %312 = vmatpush1.msra.mxu0 0.0
  %313 = vmatprep.subr.mxu0 0.0
  %314 = vmatpush1.msra.mxu0 0.0
  %315 = vmatprep.subr.mxu0 0.0
  %316 = vmatpush1.msra.mxu0 0.0
  %317 = vmatprep.subr.mxu0 0.0
  %318 = vmatpush1.msra.mxu0 0.0
  %319 = vmatprep.subr.mxu0 0.0
  %320 = vmatpush1.msra.mxu0 0.0
  %321 = vmatprep.subr.mxu0 0.0
  %322 = vmatpush1.msra.mxu0 0.0
  %323 = vmatprep.subr.mxu0 0.0
  %324 = vmatpush1.msra.mxu0 0.0
  %325 = vmatprep.subr.mxu0 0.0
  %326 = vmatpush1.msra.mxu0 0.0
  %327 = vmatprep.subr.mxu0 0.0
  %328 = vmatpush1.msra.mxu0 0.0
  %329 = vmatprep.subr.mxu0 0.0
  %330 = vmatpush1.msra.mxu0 0.0
  %331 = vmatprep.subr.mxu0 0.0
  %332 = vmatpush1.msra.mxu0 0.0
  %333 = vmatprep.subr.mxu0 0.0
  %334 = vmatpush1.msra.mxu0 0.0
  %335 = vmatprep.subr.mxu0 0.0
  %336 = vmatpush1.msra.mxu0 0.0
  %337 = vmatprep.subr.mxu0 0.0
  %338 = vmatpush1.msra.mxu0 0.0
  %339 = vmatprep.subr.mxu0 0.0
  %340 = vmatpush1.msra.mxu0 0.0
  %341 = vmatprep.subr.mxu0 0.0
  %342 = vmatpush1.msra.mxu0 0.0
  %343 = vmatprep.mubr.f32.mxu0 0.0
  %344 = vmatmul.mubr.f32.gmra.mrb[0].mxu0 %v274
  %v345 = vpop.f32.mrb[0].mxu0
  %v346 = vadd.f32 %v271, %v345
  %v347 = vpop.f32.mrb[0].mxu0
  %348 = vmatprep.mubr.f32.mxu0 0.0
  %349 = vmatmul.mubr.f32.gmra.mrb[0].mxu0 %v277
  %v350 = vpop.f32.mrb[0].mxu0
  %v351 = vadd.f32 %v271, %v350
  %v352 = vpop.f32.mrb[0].mxu0
  %353 = vdwg.mxu0
  %vm354 = vcmp.gt.f32.partialorder %v346, 0.0
  %vm355 = vcmp.gt.f32.partialorder %v351, 0.0
  %v356 = vmul.f32 %v346, 0.1
  %v357 = vmul.f32 %v351, 0.1
  %v358 = vsel %vm354, %v346, %v356
  %v359 = vsel %vm355, %v351, %v357
  %360 = vst.msk [vmem:[%s15] sm:$0xff] %vm260, %v358
  %361 = vst.msk [vmem:[%s15 + $0x8] sm:$0x3] %vm262, %v359
  %v362 = vld [vmem:[%s7] sm:$0xff]
  %v363 = vld [vmem:[%s7 + $0x8] sm:$0xff]
  %v364 = vld [vmem:[%s8] sm:$0x1]
  %v366 = vlaneseq
  %v367 = vshrl.u32 %v366, 7
  %v368 = vsub.s32 0, %v367
  %v369 = vrot.slane %v364, %v368
  %v372 = vsel %vm260, %v358, 0
  %v375 = vsel %vm260, %v359, 0
  %377 = vmatprep.subr.mxu0 0.0
  %378 = vmatpush1.msra.mxu0 %v362
  %379 = vmatprep.subr.mxu0 0.0
  %380 = vmatpush1.msra.mxu0 %v363
  %381 = vmatprep.subr.mxu0 0.0
  %382 = vmatpush1.msra.mxu0 0.0
  %383 = vmatprep.subr.mxu0 0.0
  %384 = vmatpush1.msra.mxu0 0.0
  %385 = vmatprep.subr.mxu0 0.0
  %386 = vmatpush1.msra.mxu0 0.0
  %387 = vmatprep.subr.mxu0 0.0
  %388 = vmatpush1.msra.mxu0 0.0
  %389 = vmatprep.subr.mxu0 0.0
  %390 = vmatpush1.msra.mxu0 0.0
  %391 = vmatprep.subr.mxu0 0.0
  %392 = vmatpush1.msra.mxu0 0.0
  %393 = vmatprep.subr.mxu0 0.0
  %394 = vmatpush1.msra.mxu0 0.0
  %395 = vmatprep.subr.mxu0 0.0
  %396 = vmatpush1.msra.mxu0 0.0
  %397 = vmatprep.subr.mxu0 0.0
  %398 = vmatpush1.msra.mxu0 0.0
  %399 = vmatprep.subr.mxu0 0.0
  %400 = vmatpush1.msra.mxu0 0.0
  %401 = vmatprep.subr.mxu0 0.0
  %402 = vmatpush1.msra.mxu0 0.0
  %403 = vmatprep.subr.mxu0 0.0
  %404 = vmatpush1.msra.mxu0 0.0
  %405 = vmatprep.subr.mxu0 0.0
  %406 = vmatpush1.msra.mxu0 0.0
  %407 = vmatprep.subr.mxu0 0.0
  %408 = vmatpush1.msra.mxu0 0.0
  %409 = vmatprep.subr.mxu0 0.0
  %410 = vmatpush1.msra.mxu0 0.0
  %411 = vmatprep.subr.mxu0 0.0
  %412 = vmatpush1.msra.mxu0 0.0
  %413 = vmatprep.subr.mxu0 0.0
  %414 = vmatpush1.msra.mxu0 0.0
  %415 = vmatprep.subr.mxu0 0.0
  %416 = vmatpush1.msra.mxu0 0.0
  %417 = vmatprep.subr.mxu0 0.0
  %418 = vmatpush1.msra.mxu0 0.0
  %419 = vmatprep.subr.mxu0 0.0
  %420 = vmatpush1.msra.mxu0 0.0
  %421 = vmatprep.subr.mxu0 0.0
  %422 = vmatpush1.msra.mxu0 0.0
  %423 = vmatprep.subr.mxu0 0.0
  %424 = vmatpush1.msra.mxu0 0.0
  %425 = vmatprep.subr.mxu0 0.0
  %426 = vmatpush1.msra.mxu0 0.0
  %427 = vmatprep.subr.mxu0 0.0
  %428 = vmatpush1.msra.mxu0 0.0
  %429 = vmatprep.subr.mxu0 0.0
  %430 = vmatpush1.msra.mxu0 0.0
  %431 = vmatprep.subr.mxu0 0.0
  %432 = vmatpush1.msra.mxu0 0.0
  %433 = vmatprep.subr.mxu0 0.0
  %434 = vmatpush1.msra.mxu0 0.0
  %435 = vmatprep.subr.mxu0 0.0
  %436 = vmatpush1.msra.mxu0 0.0
  %437 = vmatprep.subr.mxu0 0.0
  %438 = vmatpush1.msra.mxu0 0.0
  %439 = vmatprep.subr.mxu0 0.0
  %440 = vmatpush1.msra.mxu0 0.0
  %441 = vmatprep.mubr.f32.mxu0 0.0
  %442 = vmatmul.mubr.f32.gmra.mrb[0].mxu0 %v372
  %v443 = vpop.f32.mrb[0].mxu0
  %v444 = vadd.f32 %v369, %v443
  %v445 = vpop.f32.mrb[0].mxu0
  %446 = vmatprep.mubr.f32.mxu0 0.0
  %447 = vmatmul.mubr.f32.gmra.mrb[0].mxu0 %v375
  %v448 = vpop.f32.mrb[0].mxu0
  %v449 = vadd.f32 %v369, %v448
  %v450 = vpop.f32.mrb[0].mxu0
  %451 = vdwg.mxu0
  %vm452 = vcmp.gt.f32.partialorder %v444, 0.0
  %vm453 = vcmp.gt.f32.partialorder %v449, 0.0
  %v454 = vmul.f32 %v444, 0.1
  %v455 = vmul.f32 %v449, 0.1
  %v456 = vsel %vm452, %v444, %v454
  %v457 = vsel %vm453, %v449, %v455
  %vm458 = vcmask 261120
  %459 = vst.msk [vmem:[%s16] sm:$0xff] %vm458, %v456
  %vm460 = vcmask 254976
  %461 = vst.msk [vmem:[%s16 + $0x8] sm:$0x3] %vm460, %v457
  %v462 = vld [vmem:[%s9] sm:$0xff]
  %v463 = vld [vmem:[%s9 + $0x8] sm:$0xff]
  %v464 = vld [vmem:[%s9 + $0x10] sm:$0xff]
  %v465 = vld [vmem:[%s9 + $0x18] sm:$0xff]
  %v466 = vld [vmem:[%s10] sm:$0x1]
  %v468 = vlaneseq
  %v469 = vshrl.u32 %v468, 7
  %v470 = vsub.s32 0, %v469
  %v471 = vrot.slane %v466, %v470
  %v474 = vsel %vm458, %v456, 0
  %v477 = vsel %vm458, %v457, 0
  %479 = vmatprep.subr.mxu0 0.0
  %480 = vmatpush1.msra.mxu0 %v462
  %481 = vmatprep.subr.mxu0 0.0
  %482 = vmatpush1.msra.mxu0 %v463
  %483 = vmatprep.subr.mxu0 0.0
  %484 = vmatpush1.msra.mxu0 %v464
  %485 = vmatprep.subr.mxu0 0.0
  %486 = vmatpush1.msra.mxu0 %v465
  %487 = vmatprep.subr.mxu0 0.0
  %488 = vmatpush1.msra.mxu0 0.0
  %489 = vmatprep.subr.mxu0 0.0
  %490 = vmatpush1.msra.mxu0 0.0
  %491 = vmatprep.subr.mxu0 0.0
  %492 = vmatpush1.msra.mxu0 0.0
  %493 = vmatprep.subr.mxu0 0.0
  %494 = vmatpush1.msra.mxu0 0.0
  %495 = vmatprep.subr.mxu0 0.0
  %496 = vmatpush1.msra.mxu0 0.0
  %497 = vmatprep.subr.mxu0 0.0
  %498 = vmatpush1.msra.mxu0 0.0
  %499 = vmatprep.subr.mxu0 0.0
  %500 = vmatpush1.msra.mxu0 0.0
  %501 = vmatprep.subr.mxu0 0.0
  %502 = vmatpush1.msra.mxu0 0.0
  %503 = vmatprep.subr.mxu0 0.0
  %504 = vmatpush1.msra.mxu0 0.0
  %505 = vmatprep.subr.mxu0 0.0
  %506 = vmatpush1.msra.mxu0 0.0
  %507 = vmatprep.subr.mxu0 0.0
  %508 = vmatpush1.msra.mxu0 0.0
  %509 = vmatprep.subr.mxu0 0.0
  %510 = vmatpush1.msra.mxu0 0.0
  %511 = vmatprep.subr.mxu0 0.0
  %512 = vmatpush1.msra.mxu0 0.0
  %513 = vmatprep.subr.mxu0 0.0
  %514 = vmatpush1.msra.mxu0 0.0
  %515 = vmatprep.subr.mxu0 0.0
  %516 = vmatpush1.msra.mxu0 0.0
  %517 = vmatprep.subr.mxu0 0.0
  %518 = vmatpush1.msra.mxu0 0.0
  %519 = vmatprep.subr.mxu0 0.0
  %520 = vmatpush1.msra.mxu0 0.0
  %521 = vmatprep.subr.mxu0 0.0
  %522 = vmatpush1.msra.mxu0 0.0
  %523 = vmatprep.subr.mxu0 0.0
  %524 = vmatpush1.msra.mxu0 0.0
  %525 = vmatprep.subr.mxu0 0.0
  %526 = vmatpush1.msra.mxu0 0.0
  %527 = vmatprep.subr.mxu0 0.0
  %528 = vmatpush1.msra.mxu0 0.0
  %529 = vmatprep.subr.mxu0 0.0
  %530 = vmatpush1.msra.mxu0 0.0
  %531 = vmatprep.subr.mxu0 0.0
  %532 = vmatpush1.msra.mxu0 0.0
  %533 = vmatprep.subr.mxu0 0.0
  %534 = vmatpush1.msra.mxu0 0.0
  %535 = vmatprep.subr.mxu0 0.0
  %536 = vmatpush1.msra.mxu0 0.0
  %537 = vmatprep.subr.mxu0 0.0
  %538 = vmatpush1.msra.mxu0 0.0
  %539 = vmatprep.subr.mxu0 0.0
  %540 = vmatpush1.msra.mxu0 0.0
  %541 = vmatprep.subr.mxu0 0.0
  %542 = vmatpush1.msra.mxu0 0.0
  %543 = vmatprep.mubr.f32.mxu0 0.0
  %544 = vmatmul.mubr.f32.gmra.mrb[0].mxu0 %v474
  %v545 = vpop.f32.mrb[0].mxu0
  %v546 = vadd.f32 %v471, %v545
  %v547 = vpop.f32.mrb[0].mxu0
  %548 = vmatprep.mubr.f32.mxu0 0.0
  %549 = vmatmul.mubr.f32.gmra.mrb[0].mxu0 %v477
  %v550 = vpop.f32.mrb[0].mxu0
  %v551 = vadd.f32 %v471, %v550
  %v552 = vpop.f32.mrb[0].mxu0
  %553 = vdwg.mxu0
  %vm554 = vcmp.gt.f32.partialorder %v546, 0.0
  %vm555 = vcmp.gt.f32.partialorder %v551, 0.0
  %v556 = vmul.f32 %v546, 0.1
  %v557 = vmul.f32 %v551, 0.1
  %v558 = vsel %vm554, %v546, %v556
  %v559 = vsel %vm555, %v551, %v557
  %560 = vst.msk [vmem:[%s17] sm:$0xff] %vm458, %v558
  %561 = vst.msk [vmem:[%s17 + $0x8] sm:$0x3] %vm460, %v559
  %v562 = vld [vmem:[%s11] sm:$0xff]
  %v563 = vld [vmem:[%s11 + $0x8] sm:$0xff]
  %v564 = vld [vmem:[%s11 + $0x10] sm:$0xff]
  %v565 = vld [vmem:[%s11 + $0x18] sm:$0xff]
  %v566 = vld [vmem:[#allocation2] sm:$0x1]
  %v568 = vlaneseq
  %v569 = vshrl.u32 %v568, 7
  %v570 = vsub.s32 0, %v569
  %v571 = vrot.slane %v566, %v570
  %v574 = vsel %vm458, %v558, 0
  %v577 = vsel %vm458, %v559, 0
  %579 = vmatprep.subr.mxu0 0.0
  %580 = vmatpush1.msra.mxu0 %v562
  %581 = vmatprep.subr.mxu0 0.0
  %582 = vmatpush1.msra.mxu0 %v563
  %583 = vmatprep.subr.mxu0 0.0
  %584 = vmatpush1.msra.mxu0 %v564
  %585 = vmatprep.subr.mxu0 0.0
  %586 = vmatpush1.msra.mxu0 %v565
  %587 = vmatprep.subr.mxu0 0.0
  %588 = vmatpush1.msra.mxu0 0.0
  %589 = vmatprep.subr.mxu0 0.0
  %590 = vmatpush1.msra.mxu0 0.0
  %591 = vmatprep.subr.mxu0 0.0
  %592 = vmatpush1.msra.mxu0 0.0
  %593 = vmatprep.subr.mxu0 0.0
  %594 = vmatpush1.msra.mxu0 0.0
  %595 = vmatprep.subr.mxu0 0.0
  %596 = vmatpush1.msra.mxu0 0.0
  %597 = vmatprep.subr.mxu0 0.0
  %598 = vmatpush1.msra.mxu0 0.0
  %599 = vmatprep.subr.mxu0 0.0
  %600 = vmatpush1.msra.mxu0 0.0
  %601 = vmatprep.subr.mxu0 0.0
  %602 = vmatpush1.msra.mxu0 0.0
  %603 = vmatprep.subr.mxu0 0.0
  %604 = vmatpush1.msra.mxu0 0.0
  %605 = vmatprep.subr.mxu0 0.0
  %606 = vmatpush1.msra.mxu0 0.0
  %607 = vmatprep.subr.mxu0 0.0
  %608 = vmatpush1.msra.mxu0 0.0
  %609 = vmatprep.subr.mxu0 0.0
  %610 = vmatpush1.msra.mxu0 0.0
  %611 = vmatprep.subr.mxu0 0.0
  %612 = vmatpush1.msra.mxu0 0.0
  %613 = vmatprep.subr.mxu0 0.0
  %614 = vmatpush1.msra.mxu0 0.0
  %615 = vmatprep.subr.mxu0 0.0
  %616 = vmatpush1.msra.mxu0 0.0
  %617 = vmatprep.subr.mxu0 0.0
  %618 = vmatpush1.msra.mxu0 0.0
  %619 = vmatprep.subr.mxu0 0.0
  %620 = vmatpush1.msra.mxu0 0.0
  %621 = vmatprep.subr.mxu0 0.0
  %622 = vmatpush1.msra.mxu0 0.0
  %623 = vmatprep.subr.mxu0 0.0
  %624 = vmatpush1.msra.mxu0 0.0
  %625 = vmatprep.subr.mxu0 0.0
  %626 = vmatpush1.msra.mxu0 0.0
  %627 = vmatprep.subr.mxu0 0.0
  %628 = vmatpush1.msra.mxu0 0.0
  %629 = vmatprep.subr.mxu0 0.0
  %630 = vmatpush1.msra.mxu0 0.0
  %631 = vmatprep.subr.mxu0 0.0
  %632 = vmatpush1.msra.mxu0 0.0
  %633 = vmatprep.subr.mxu0 0.0
  %634 = vmatpush1.msra.mxu0 0.0
  %635 = vmatprep.subr.mxu0 0.0
  %636 = vmatpush1.msra.mxu0 0.0
  %637 = vmatprep.subr.mxu0 0.0
  %638 = vmatpush1.msra.mxu0 0.0
  %639 = vmatprep.subr.mxu0 0.0
  %640 = vmatpush1.msra.mxu0 0.0
  %641 = vmatprep.subr.mxu0 0.0
  %642 = vmatpush1.msra.mxu0 0.0
  %643 = vmatprep.mubr.f32.mxu0 0.0
  %644 = vmatmul.mubr.f32.gmra.mrb[0].mxu0 %v574
  %v645 = vpop.f32.mrb[0].mxu0
  %v646 = vadd.f32 %v571, %v645
  %v647 = vpop.f32.mrb[0].mxu0
  %648 = vmatprep.mubr.f32.mxu0 0.0
  %649 = vmatmul.mubr.f32.gmra.mrb[0].mxu0 %v577
  %v650 = vpop.f32.mrb[0].mxu0
  %v651 = vadd.f32 %v571, %v650
  %v652 = vpop.f32.mrb[0].mxu0
  %653 = vdwg.mxu0
  %vm654 = vcmask 7168
  %655 = vst.msk [vmem:[%s18] sm:$0xff] %vm654, %v646
  %vm656 = vcmask 1024
  %657 = vst.msk [vmem:[%s18 + $0x8] sm:$0x3] %vm656, %v651
  // Predicated region
  $region54: #{_lambda_.5} parent=0 // pred_check
    _
  $region55: #{_lambda_.5} parent=0 // pred_check_branch
    %659 = sbr.rel (0) target = $region57
  $region56: #{_lambda_.5} parent=0 // pred_region
    _
  $region57: #{_lambda_.5} parent=0 // pred_fallthru
    _
  // Predicated region
  $region58: #{_lambda_.5} parent=0 // pred_check
    _
  $region59: #{_lambda_.5} parent=0 // pred_check_branch
    %661 = sbr.rel (0) target = $region61
  $region60: #{_lambda_.5} parent=0 // pred_region
    _
  $region61: #{_lambda_.5} parent=0 // pred_fallthru
    _
  // Predicated region
  $region62: #{_lambda_.5} parent=0 // pred_check
    _
  $region63: #{_lambda_.5} parent=0 // pred_check_branch
    %663 = sbr.rel (0) target = $region65
  $region64: #{_lambda_.5} parent=0 // pred_region
    _
  $region65: #{_lambda_.5} parent=0 // pred_fallthru
    _
  // Predicated region
  $region66: #{_lambda_.5} parent=0 // pred_check
    _
  $region67: #{_lambda_.5} parent=0 // pred_check_branch
    %665 = sbr.rel (0) target = $region69
  $region68: #{_lambda_.5} parent=0 // pred_region
    _
  $region69: #{_lambda_.5} parent=0 // pred_fallthru
    _
  // Predicated region
  $region70: #{_lambda_.5} parent=0 // pred_check
    _
  $region71: #{_lambda_.5} parent=0 // pred_check_branch
    %667 = sbr.rel (0) target = $region73
  $region72: #{_lambda_.5} parent=0 // pred_region
    _
  $region73: #{_lambda_.5} parent=0 // pred_fallthru
    _
  // Predicated region
  $region74: #{_lambda_.5} parent=0 // pred_check
    _
  $region75: #{_lambda_.5} parent=0 // pred_check_branch
    %669 = sbr.rel (0) target = $region77
  $region76: #{_lambda_.5} parent=0 // pred_region
    _
  $region77: #{_lambda_.5} parent=0 // pred_fallthru
    _
  // Predicated region
  $region78: #{_lambda_.5} parent=0 // pred_check
    _
  $region79: #{_lambda_.5} parent=0 // pred_check_branch
    %671 = sbr.rel (0) target = $region81
  $region80: #{_lambda_.5} parent=0 // pred_region
    _
  $region81: #{_lambda_.5} parent=0 // pred_fallthru
    _
  // Predicated region
  $region82: #{_lambda_.5} parent=0 // pred_check
    _
  $region83: #{_lambda_.5} parent=0 // pred_check_branch
    %673 = sbr.rel (0) target = $region85
  $region84: #{_lambda_.5} parent=0 // pred_region
    _
  $region85: #{_lambda_.5} parent=0 // pred_fallthru
    _
  // Predicated region
  $region86: #{_lambda_.5} parent=0 // pred_check
    _
  $region87: #{_lambda_.5} parent=0 // pred_check_branch
    %675 = sbr.rel (0) target = $region89
  $region88: #{_lambda_.5} parent=0 // pred_region
    _
  $region89: #{_lambda_.5} parent=0 // pred_fallthru
    _
  // Predicated region
  $region90: #{_lambda_.5} parent=0 // pred_check
    _
  $region91: #{_lambda_.5} parent=0 // pred_check_branch
    %677 = sbr.rel (0) target = $region93
  $region92: #{_lambda_.5} parent=0 // pred_region
    _
  $region93: #{_lambda_.5} parent=0 // pred_fallthru
    _
  // Predicated region
  $region94: #{_lambda_.5} parent=0 // pred_check
    _
  $region95: #{_lambda_.5} parent=0 // pred_check_branch
    %679 = sbr.rel (0) target = $region97
  $region96: #{_lambda_.5} parent=0 // pred_region
    _
  $region97: #{_lambda_.5} parent=0 // pred_fallthru
    _
  // Predicated region
  $region98: #{_lambda_.5} parent=0 // pred_check
    _
  $region99: #{_lambda_.5} parent=0 // pred_check_branch
    %681 = sbr.rel (0) target = $region101
  $region100: #{_lambda_.5} parent=0 // pred_region
    _
  $region101: #{_lambda_.5} parent=0 // pred_fallthru
    _

</llo_original>
